<compile_context>
chip_gen: v7x
topology: tpu7x:2x2x1
jax: 0.10.0
libtpu: 0.0.40
codegen_flags: <defaults>
</compile_context>

<pallas_src>
import functools

import jax
import jax.numpy as jnp
from jax.experimental import pallas as pl
from jax.experimental.pallas import tpu as pltpu


IMG_SIZE = 28
IN_FEATURES = IMG_SIZE * IMG_SIZE          # 784
H1 = 512
H2 = 256
OUT = 1
NEG_SLOPE = 0.2
TM_MAX = 1024                              # big batch tile: amortizes per-step overhead
L3_PAD = 128                               # lane-aligned padded width for MXU layer 3

# Generation-specific layer-3 placement: MXU on v6e/v7x, VPU/XLU reduction on v5e.
try:
    _DEVICE_KIND = jax.devices()[0].device_kind.lower()
except Exception:  # pragma: no cover - defensive; default backend is TPU
    _DEVICE_KIND = ""
USE_MXU_LAYER3 = "v5" not in _DEVICE_KIND


def _round_up(x, m):
    return ((x + m - 1) // m) * m


def _choose_tm(B):
    """Batch tile: multiple of 8, <= TM_MAX, aiming for >= 2 grid tiles (v7x)."""
    tm = _round_up(max(-(-B // 2), 1), 8)
    return min(tm, TM_MAX)


def _leaky_relu(x, slope):
    return jnp.where(x > 0, x, slope * x)


def _discriminator_kernel(x_ref, w1_ref, b1_ref, w2_ref, b2_ref, w3_ref, b3_ref,
                          o_ref, *, use_mxu_layer3):
    # x_ref: (TM, 784) f32 ; w1: (784, 512) bf16 ; w2: (512, 256) bf16
    # b1: (1, 512) f32 ; b2: (1, 256) f32 ; b3: (1, 1) f32
    # w3: (256, 128) bf16 (MXU path)  or  (1, 256) f32 (VPU/XLU path)
    x = x_ref[...].astype(jnp.bfloat16)                                  # (TM, 784)

    # Layer 1: MXU bf16 matmul, f32 accumulate; bias + LeakyReLU in f32 on VPU.
    h1 = jnp.dot(x, w1_ref[...], preferred_element_type=jnp.float32)    # (TM, 512)
    h1 = _leaky_relu(h1 + b1_ref[...], NEG_SLOPE)

    # Layer 2.
    h2 = jnp.dot(h1.astype(jnp.bfloat16), w2_ref[...],
                 preferred_element_type=jnp.float32)                    # (TM, 256)
    h2 = _leaky_relu(h2 + b2_ref[...], NEG_SLOPE)

    # Layer 3 (N=1).
    if use_mxu_layer3:
        # v6e/v7x: MXU has slack -> padded (256, 128) matmul, take column 0.
        y_full = jnp.dot(h2.astype(jnp.bfloat16), w3_ref[...],
                         preferred_element_type=jnp.float32)            # (TM, 128)
        y = y_full[:, 0:1] + b3_ref[...]
    else:
        # v5e: MXU-bound -> keep the reduction on VPU/XLU.
        y = jnp.sum(h2 * w3_ref[...], axis=-1, keepdims=True) + b3_ref[...]

    o_ref[...] = y.astype(o_ref.dtype)


def prepare_params(params, use_mxu_layer3=USE_MXU_LAYER3):
    """One-time conversion of f32 params into kernel-ready (bf16 / reshaped) form.

    Weight layout is (in_features, out_features); torch-exported (out, in)
    weights would need a transpose and (H,) biases are reshaped here.
    """
    w1, b1, w2, b2, w3, b3 = params
    w1p = jnp.asarray(w1, jnp.float32).astype(jnp.bfloat16)              # (784, 512)
    b1p = jnp.asarray(b1, jnp.float32).reshape(1, H1)
    w2p = jnp.asarray(w2, jnp.float32).astype(jnp.bfloat16)              # (512, 256)
    b2p = jnp.asarray(b2, jnp.float32).reshape(1, H2)
    b3p = jnp.asarray(b3, jnp.float32).reshape(1, 1)
    w3f = jnp.asarray(w3, jnp.float32).reshape(H2)
    if use_mxu_layer3:
        w3p = jnp.zeros((H2, L3_PAD), jnp.bfloat16).at[:, 0].set(
            w3f.astype(jnp.bfloat16))
    else:
        w3p = w3f.reshape(1, H2)
    return (w1p, b1p, w2p, b2p, w3p, b3p)


@functools.partial(jax.jit, static_argnames=("use_mxu_layer3",))
def discriminator_forward(x_nchw, prepared_params, use_mxu_layer3=USE_MXU_LAYER3):
    """x_nchw: (B, 1, 28, 28) float32 -> (B, 1) float32."""
    w1, b1, w2, b2, w3, b3 = prepared_params
    B = x_nchw.shape[0]

    # Flatten exactly like torch .view(B, -1).  No K padding, no bf16 copy:
    # the cast happens inside the kernel on the pipelined tile.
    x_flat = x_nchw.reshape(B, -1).astype(jnp.float32)                   # (B, 784)

    tm = _choose_tm(B)
    b_pad = _round_up(B, tm)
    if b_pad > B:
        x_flat = jnp.pad(x_flat, ((0, b_pad - B), (0, 0)))
    grid = (b_pad // tm,)

    kernel = functools.partial(_discriminator_kernel,
                               use_mxu_layer3=use_mxu_layer3)
    w3_block = (H2, L3_PAD) if use_mxu_layer3 else (1, H2)

    out = pl.pallas_call(
        kernel,
        out_shape=jax.ShapeDtypeStruct((b_pad, OUT), jnp.float32),
        grid_spec=pltpu.PrefetchScalarGridSpec(
            num_scalar_prefetch=0,
            grid=grid,
            in_specs=[
                pl.BlockSpec((tm, IN_FEATURES), lambda i: (i, 0)),   # x tile (pipelined)
                pl.BlockSpec((IN_FEATURES, H1), lambda i: (0, 0)),   # w1 (VMEM resident)
                pl.BlockSpec((1, H1), lambda i: (0, 0)),             # b1
                pl.BlockSpec((H1, H2), lambda i: (0, 0)),            # w2
                pl.BlockSpec((1, H2), lambda i: (0, 0)),             # b2
                pl.BlockSpec(w3_block, lambda i: (0, 0)),            # w3
                pl.BlockSpec((1, 1), lambda i: (0, 0)),              # b3
            ],
            out_specs=pl.BlockSpec((tm, OUT), lambda i: (i, 0)),
        ),
        compiler_params=pltpu.CompilerParams(
            dimension_semantics=("parallel",),
        ),
    )(x_flat, w1, b1, w2, b2, w3, b3)

    return out[:B]


def init_params(key):
    """Deterministic init mimicking PyTorch Linear default (U[-1/sqrt(fan_in), +])."""
    ks = jax.random.split(key, 6)

    def lin(kw, kb, fan_in, fan_out):
        bound = 1.0 / jnp.sqrt(fan_in)
        w = jax.random.uniform(kw, (fan_in, fan_out), jnp.float32, -bound, bound)
        b = jax.random.uniform(kb, (1, fan_out), jnp.float32, -bound, bound)
        return w, b

    w1, b1 = lin(ks[0], ks[1], IN_FEATURES, H1)
    w2, b2 = lin(ks[2], ks[3], H1, H2)
    w3, b3 = lin(ks[4], ks[5], H2, OUT)
    return (w1, b1, w2, b2, w3, b3)


def reference_forward(x_nchw, params):
    w1, b1, w2, b2, w3, b3 = params
    x = x_nchw.reshape(x_nchw.shape[0], -1)
    h1 = _leaky_relu(x @ w1 + b1, NEG_SLOPE)
    h2 = _leaky_relu(h1 @ w2 + b2, NEG_SLOPE)
    return h2 @ w3 + b3


if __name__ == "__main__":
    key = jax.random.PRNGKey(0)
    k_x, k_p = jax.random.split(key)

    B = 8
    x = jax.random.normal(k_x, (B, 1, IMG_SIZE, IMG_SIZE), jnp.float32)
    params = init_params(k_p)

    prepared = prepare_params(params, USE_MXU_LAYER3)   # one-time, off the hot path
    y = discriminator_forward(x, prepared, use_mxu_layer3=USE_MXU_LAYER3)
    y = jax.block_until_ready(y)

    y_ref = reference_forward(x, params)
    assert y.shape == (B, 1)
    # bf16 matmul inputs (f32 accumulation) -> relaxed tolerance vs f32 reference.
    assert jnp.allclose(y, y_ref, atol=5e-2, rtol=5e-2), "mismatch vs JAX reference"

    print("KERNEL_OK")
</pallas_src>

<mosaic_0001>
module attributes {stable_mosaic.version = 11 : i64} {
  func.func @_discriminator_kernel(%arg0: i32, %arg1: memref<8x784xf32, #tpu.memory_space<vmem>>, %arg2: memref<784x512xbf16, #tpu.memory_space<vmem>>, %arg3: memref<1x512xf32, #tpu.memory_space<vmem>>, %arg4: memref<512x256xbf16, #tpu.memory_space<vmem>>, %arg5: memref<1x256xf32, #tpu.memory_space<vmem>>, %arg6: memref<256x128xbf16, #tpu.memory_space<vmem>>, %arg7: memref<1x1xf32, #tpu.memory_space<vmem>>, %arg8: memref<8x1xf32, #tpu.memory_space<vmem>>) attributes {dimension_semantics = [#tpu.dimension_semantics<parallel>], iteration_bounds = array<i64: 1>, scalar_prefetch = 0 : i64, scratch_operands = 0 : i64, tpu.core_type = #tpu.core_type<tc>, window_params = [{transform_indices = @transform_0, window_bounds = array<i64: 8, 784>}, {pipeline_mode = #tpu.pipeline_mode<synchronous>, transform_indices = @transform_1, window_bounds = array<i64: 784, 512>}, {pipeline_mode = #tpu.pipeline_mode<synchronous>, transform_indices = @transform_2, window_bounds = array<i64: 1, 512>}, {pipeline_mode = #tpu.pipeline_mode<synchronous>, transform_indices = @transform_3, window_bounds = array<i64: 512, 256>}, {pipeline_mode = #tpu.pipeline_mode<synchronous>, transform_indices = @transform_4, window_bounds = array<i64: 1, 256>}, {pipeline_mode = #tpu.pipeline_mode<synchronous>, transform_indices = @transform_5, window_bounds = array<i64: 256, 128>}, {pipeline_mode = #tpu.pipeline_mode<synchronous>, transform_indices = @transform_6, window_bounds = array<i64: 1, 1>}, {transform_indices = @transform_7, window_bounds = array<i64: 8, 1>}]} {
    %c0 = arith.constant 0 : index
    %c0_0 = arith.constant 0 : index
    %0 = vector.load %arg1[%c0, %c0_0] : memref<8x784xf32, #tpu.memory_space<vmem>>, vector<8x784xf32>
    %1 = arith.truncf %0 : vector<8x784xf32> to vector<8x784xbf16>
    %c0_1 = arith.constant 0 : index
    %c0_2 = arith.constant 0 : index
    %2 = vector.load %arg2[%c0_1, %c0_2] : memref<784x512xbf16, #tpu.memory_space<vmem>>, vector<784x512xbf16>
    %cst = arith.constant dense<0.000000e+00> : vector<8x512xf32>
    %3 = tpu.matmul %1, %2, %cst {dimension_numbers = #tpu.dot_dimension_numbers<[1], [0], [0], [1], [0, 0, 1, 1], [], []>} : vector<8x784xbf16>, vector<784x512xbf16>, vector<8x512xf32> -> vector<8x512xf32>
    %c0_3 = arith.constant 0 : index
    %c0_4 = arith.constant 0 : index
    %4 = vector.load %arg3[%c0_3, %c0_4] : memref<1x512xf32, #tpu.memory_space<vmem>>, vector<1x512xf32>
    %5 = vector.broadcast %4 : vector<1x512xf32> to vector<8x512xf32>
    %6 = arith.addf %3, %5 : vector<8x512xf32>
    %cst_5 = arith.constant 0.000000e+00 : f32
    %7 = vector.broadcast %cst_5 : f32 to vector<8x512xf32>
    %8 = arith.cmpf ogt, %6, %7 : vector<8x512xf32>
    %cst_6 = arith.constant 2.000000e-01 : f32
    %9 = vector.broadcast %cst_6 : f32 to vector<8x512xf32>
    %10 = arith.mulf %9, %6 : vector<8x512xf32>
    %11 = arith.select %8, %6, %10 : vector<8x512xi1>, vector<8x512xf32>
    %12 = arith.truncf %11 : vector<8x512xf32> to vector<8x512xbf16>
    %c0_7 = arith.constant 0 : index
    %c0_8 = arith.constant 0 : index
    %13 = vector.load %arg4[%c0_7, %c0_8] : memref<512x256xbf16, #tpu.memory_space<vmem>>, vector<512x256xbf16>
    %cst_9 = arith.constant dense<0.000000e+00> : vector<8x256xf32>
    %14 = tpu.matmul %12, %13, %cst_9 {dimension_numbers = #tpu.dot_dimension_numbers<[1], [0], [0], [1], [0, 0, 1, 1], [], []>} : vector<8x512xbf16>, vector<512x256xbf16>, vector<8x256xf32> -> vector<8x256xf32>
    %c0_10 = arith.constant 0 : index
    %c0_11 = arith.constant 0 : index
    %15 = vector.load %arg5[%c0_10, %c0_11] : memref<1x256xf32, #tpu.memory_space<vmem>>, vector<1x256xf32>
    %16 = vector.broadcast %15 : vector<1x256xf32> to vector<8x256xf32>
    %17 = arith.addf %14, %16 : vector<8x256xf32>
    %cst_12 = arith.constant 0.000000e+00 : f32
    %18 = vector.broadcast %cst_12 : f32 to vector<8x256xf32>
    %19 = arith.cmpf ogt, %17, %18 : vector<8x256xf32>
    %cst_13 = arith.constant 2.000000e-01 : f32
    %20 = vector.broadcast %cst_13 : f32 to vector<8x256xf32>
    %21 = arith.mulf %20, %17 : vector<8x256xf32>
    %22 = arith.select %19, %17, %21 : vector<8x256xi1>, vector<8x256xf32>
    %23 = arith.truncf %22 : vector<8x256xf32> to vector<8x256xbf16>
    %c0_14 = arith.constant 0 : index
    %c0_15 = arith.constant 0 : index
    %24 = vector.load %arg6[%c0_14, %c0_15] : memref<256x128xbf16, #tpu.memory_space<vmem>>, vector<256x128xbf16>
    %cst_16 = arith.constant dense<0.000000e+00> : vector<8x128xf32>
    %25 = tpu.matmul %23, %24, %cst_16 {dimension_numbers = #tpu.dot_dimension_numbers<[1], [0], [0], [1], [0, 0, 1, 1], [], []>} : vector<8x256xbf16>, vector<256x128xbf16>, vector<8x128xf32> -> vector<8x128xf32>
    %26 = vector.extract_strided_slice %25 {offsets = [0, 0], sizes = [8, 1], strides = [1, 1]} : vector<8x128xf32> to vector<8x1xf32>
    %c0_17 = arith.constant 0 : index
    %c0_18 = arith.constant 0 : index
    %27 = vector.load %arg7[%c0_17, %c0_18] : memref<1x1xf32, #tpu.memory_space<vmem>>, vector<1x1xf32>
    %28 = vector.broadcast %27 : vector<1x1xf32> to vector<8x1xf32>
    %29 = arith.addf %26, %28 : vector<8x1xf32>
    %c0_19 = arith.constant 0 : index
    %c0_20 = arith.constant 0 : index
    %30 = vector.load %arg8[%c0_19, %c0_20] : memref<8x1xf32, #tpu.memory_space<vmem>>, vector<8x1xf32>
    tpu.vector_store %arg8[%c0_19, %c0_20], %29 {strides = array<i32>} : memref<8x1xf32, #tpu.memory_space<vmem>>, vector<8x1xf32>,
    return
  }
  func.func @transform_0(%arg0: i32) -> (i32, i32) {
    %c0_i32 = arith.constant 0 : i32
    %c0_i32_0 = arith.constant 0 : i32
    return %arg0, %c0_i32 : i32, i32
  }
  func.func @transform_1(%arg0: i32) -> (i32, i32) {
    %c0_i32 = arith.constant 0 : i32
    %c0_i32_0 = arith.constant 0 : i32
    %c0_i32_1 = arith.constant 0 : i32
    return %c0_i32, %c0_i32_0 : i32, i32
  }
  func.func @transform_2(%arg0: i32) -> (i32, i32) {
    %c0_i32 = arith.constant 0 : i32
    %c0_i32_0 = arith.constant 0 : i32
    %c0_i32_1 = arith.constant 0 : i32
    return %c0_i32, %c0_i32_0 : i32, i32
  }
  func.func @transform_3(%arg0: i32) -> (i32, i32) {
    %c0_i32 = arith.constant 0 : i32
    %c0_i32_0 = arith.constant 0 : i32
    %c0_i32_1 = arith.constant 0 : i32
    return %c0_i32, %c0_i32_0 : i32, i32
  }
  func.func @transform_4(%arg0: i32) -> (i32, i32) {
    %c0_i32 = arith.constant 0 : i32
    %c0_i32_0 = arith.constant 0 : i32
    %c0_i32_1 = arith.constant 0 : i32
    return %c0_i32, %c0_i32_0 : i32, i32
  }
  func.func @transform_5(%arg0: i32) -> (i32, i32) {
    %c0_i32 = arith.constant 0 : i32
    %c0_i32_0 = arith.constant 0 : i32
    %c0_i32_1 = arith.constant 0 : i32
    return %c0_i32, %c0_i32_0 : i32, i32
  }
  func.func @transform_6(%arg0: i32) -> (i32, i32) {
    %c0_i32 = arith.constant 0 : i32
    %c0_i32_0 = arith.constant 0 : i32
    %c0_i32_1 = arith.constant 0 : i32
    return %c0_i32, %c0_i32_0 : i32, i32
  }
  func.func @transform_7(%arg0: i32) -> (i32, i32) {
    %c0_i32 = arith.constant 0 : i32
    %c0_i32_0 = arith.constant 0 : i32
    return %arg0, %c0_i32 : i32, i32
  }
}

</mosaic_0001>

<llo_original>
// kernel: discriminator_forward.1
$region0: #{discriminator_forward.1}
  #allocation0 [shape = 'u32[]', space=smem, size = 0x4, offset = 0x4, fixed_abs, tag = 'smem constant byte address 0x4 - core index']
  #allocation1 [shape = 'u32[144,128]{1,0:T(1,128)}', space=vmem, size = 0x12000, scoped, tag = 'internal scratch']
  #allocation2 [shape = 'f32[1,1]{1,0:T(1,128)S(1)}', space=vmem, size = 0x200, scoped, tag = 'scoped memory for discriminator_forward.1']
  %s0 = inlined_call_operand.vmem [shape: f32[8,784], index: 0, kind: input, shape index: {}]
  %s1 = inlined_call_operand.hbm [shape: bf16[784,512], index: 1, kind: input, shape index: {}]
  %s2 = inlined_call_operand.vmem [shape: f32[1,512], index: 2, kind: input, shape index: {}]
  %s3 = inlined_call_operand.vmem [shape: bf16[512,256], index: 3, kind: input, shape index: {}]
  %s4 = inlined_call_operand.vmem [shape: f32[1,256], index: 4, kind: input, shape index: {}]
  %s5 = inlined_call_operand.vmem [shape: bf16[256,128], index: 5, kind: input, shape index: {}]
  %s6 = inlined_call_operand.<no memory space> [shape: f32[1,1], index: 6, kind: input, shape index: {}]
  %s7 = inlined_call_operand.vmem [shape: f32[8,1], index: 7, kind: output, shape index: {}]
  %s8 = sld [smem:[#allocation0]]
  $region42: #{discriminator_forward.1} parent=0
    _
  %s10 = ssub.s32 1, %s8
  %s11 = scalar_select 0, %s10, %s8
  %v12 = vstv %s6
  %13 = vst [vmem:[#allocation2] sm:$0x1] %v12
  $region1: #{discriminator_forward.1} parent=0
    #allocation3 [shape = 'u8[802816]{0}', space=vmem, size = 0xc4000, scoped, tag = 'input window, operand 1, single buffered']
    #allocation4 [shape = 's32[1]{0}', space=sflag, size = 0x4, scoped, tag = 'scoped memory for discriminator_forward.1']
    %14 = vsyncpa [#allocation4], 0
    // Predicated region
    $region2: #{discriminator_forward.1} parent=1 // pred_check
      _
    $region3: #{discriminator_forward.1} parent=1 // pred_check_branch
      %16 = sbr.rel (0) target = $region5
    $region4: #{discriminator_forward.1} parent=1 // pred_region
      _
    $region5: #{discriminator_forward.1} parent=1 // pred_fallthru
      _
    // Predicated region
    $region6: #{discriminator_forward.1} parent=1 // pred_check
      _
    $region7: #{discriminator_forward.1} parent=1 // pred_check_branch
      %18 = sbr.rel (0) target = $region9
    $region8: #{discriminator_forward.1} parent=1 // pred_region
      %s20 = ssub.s32 25088, 25088
      %21 = vsyncadd [#allocation4], %s20
      %s22 = sshll.u32 [#allocation3], 4
      %s23 = int_to_ptr.vmem [resolvable:$true] %s22
      %28 = dma.hbm_to_vmem [thread:$0]  %s1, 25088, %s23, [#allocation4], 256, 256, 16
    $region9: #{discriminator_forward.1} parent=1 // pred_fallthru
      _
    // Predicated region
    $region10: #{discriminator_forward.1} parent=1 // pred_check
      _
    $region11: #{discriminator_forward.1} parent=1 // pred_check_branch
      %30 = sbr.rel (0) target = $region13
    $region12: #{discriminator_forward.1} parent=1 // pred_region
      _
    $region13: #{discriminator_forward.1} parent=1 // pred_fallthru
      _
    // Predicated region
    $region14: #{discriminator_forward.1} parent=1 // pred_check
      _
    $region15: #{discriminator_forward.1} parent=1 // pred_check_branch
      %32 = sbr.rel (0) target = $region17
    $region16: #{discriminator_forward.1} parent=1 // pred_region
      _
    $region17: #{discriminator_forward.1} parent=1 // pred_fallthru
      _
    // Predicated region
    $region18: #{discriminator_forward.1} parent=1 // pred_check
      _
    $region19: #{discriminator_forward.1} parent=1 // pred_check_branch
      %34 = sbr.rel (0) target = $region21
    $region20: #{discriminator_forward.1} parent=1 // pred_region
      _
    $region21: #{discriminator_forward.1} parent=1 // pred_fallthru
      _
    // Predicated region
    $region22: #{discriminator_forward.1} parent=1 // pred_check
      _
    $region23: #{discriminator_forward.1} parent=1 // pred_check_branch
      %36 = sbr.rel (0) target = $region25
    $region24: #{discriminator_forward.1} parent=1 // pred_region
      _
    $region25: #{discriminator_forward.1} parent=1 // pred_fallthru
      _
    // Predicated region
    $region26: #{discriminator_forward.1} parent=1 // pred_check
      _
    $region27: #{discriminator_forward.1} parent=1 // pred_check_branch
      %38 = sbr.rel (0) target = $region29
    $region28: #{discriminator_forward.1} parent=1 // pred_region
      _
    $region29: #{discriminator_forward.1} parent=1 // pred_fallthru
      _
    // Predicated region
    $region30: #{discriminator_forward.1} parent=1 // pred_check
      _
    $region31: #{discriminator_forward.1} parent=1 // pred_check_branch
      %40 = sbr.rel (0) target = $region33
    $region32: #{discriminator_forward.1} parent=1 // pred_region
      %41 = dma.done [#allocation4], 25088
    $region33: #{discriminator_forward.1} parent=1 // pred_fallthru
      _
    %v43 = vld [vmem:[%s0] sm:$0xff]
    %v44 = vld [vmem:[%s0 + $0x8] sm:$0xff]
    %v45 = vld [vmem:[%s0 + $0x10] sm:$0xff]
    %v46 = vld [vmem:[%s0 + $0x18] sm:$0xff]
    %v47 = vld [vmem:[%s0 + $0x20] sm:$0xff]
    %v48 = vld [vmem:[%s0 + $0x28] sm:$0xff]
    %v49 = vld [vmem:[%s0 + $0x30] sm:$0xff]
    %v50 = vpack.c.bf16 %v43, %v43
    %v51 = vpack.c.bf16 %v44, %v44
    %v52 = vpack.c.bf16 %v45, %v45
    %v53 = vpack.c.bf16 %v46, %v46
    %v54 = vpack.c.bf16 %v47, %v47
    %v55 = vpack.c.bf16 %v48, %v48
    %v56 = vpack.c.bf16 %v49, %v49
    %v57 = vld [vmem:[#allocation3] sm:$0xff]
    %v58 = vld [vmem:[#allocation3 + $0x8] sm:$0xff]
    %v59 = vld [vmem:[#allocation3 + $0x10] sm:$0xff]
    %v60 = vld [vmem:[#allocation3 + $0x18] sm:$0xff]
    %v61 = vld [vmem:[#allocation3 + $0x20] sm:$0xff]
    %v62 = vld [vmem:[#allocation3 + $0x28] sm:$0xff]
    %v63 = vld [vmem:[#allocation3 + $0x30] sm:$0xff]
    %v64 = vld [vmem:[#allocation3 + $0x38] sm:$0xff]
    %v65 = vld [vmem:[#allocation3 + $0x40] sm:$0xff]
    %v66 = vld [vmem:[#allocation3 + $0x48] sm:$0xff]
    %v67 = vld [vmem:[#allocation3 + $0x50] sm:$0xff]
    %v68 = vld [vmem:[#allocation3 + $0x58] sm:$0xff]
    %v69 = vld [vmem:[#allocation3 + $0x60] sm:$0xff]
    %v70 = vld [vmem:[#allocation3 + $0x68] sm:$0xff]
    %v71 = vld [vmem:[#allocation3 + $0x70] sm:$0xff]
    %v72 = vld [vmem:[#allocation3 + $0x78] sm:$0xff]
    %v73 = vld [vmem:[#allocation3 + $0x80] sm:$0xff]
    %v74 = vld [vmem:[#allocation3 + $0x88] sm:$0xff]
    %v75 = vld [vmem:[#allocation3 + $0x90] sm:$0xff]
    %v76 = vld [vmem:[#allocation3 + $0x98] sm:$0xff]
    %v77 = vld [vmem:[#allocation3 + $0xa0] sm:$0xff]
    %v78 = vld [vmem:[#allocation3 + $0xa8] sm:$0xff]
    %v79 = vld [vmem:[#allocation3 + $0xb0] sm:$0xff]
    %v80 = vld [vmem:[#allocation3 + $0xb8] sm:$0xff]
    %v81 = vld [vmem:[#allocation3 + $0xc0] sm:$0xff]
    %v82 = vld [vmem:[#allocation3 + $0xc8] sm:$0xff]
    %v83 = vld [vmem:[#allocation3 + $0xd0] sm:$0xff]
    %v84 = vld [vmem:[#allocation3 + $0xd8] sm:$0xff]
    %v85 = vld [vmem:[#allocation3 + $0xe0] sm:$0xff]
    %v86 = vld [vmem:[#allocation3 + $0xe8] sm:$0xff]
    %v87 = vld [vmem:[#allocation3 + $0xf0] sm:$0xff]
    %v88 = vld [vmem:[#allocation3 + $0xf8] sm:$0xff]
    %v89 = vld [vmem:[#allocation3 + $0x100] sm:$0xff]
    %v90 = vld [vmem:[#allocation3 + $0x108] sm:$0xff]
    %v91 = vld [vmem:[#allocation3 + $0x110] sm:$0xff]
    %v92 = vld [vmem:[#allocation3 + $0x118] sm:$0xff]
    %v93 = vld [vmem:[#allocation3 + $0x120] sm:$0xff]
    %v94 = vld [vmem:[#allocation3 + $0x128] sm:$0xff]
    %v95 = vld [vmem:[#allocation3 + $0x130] sm:$0xff]
    %v96 = vld [vmem:[#allocation3 + $0x138] sm:$0xff]
    %v97 = vld [vmem:[#allocation3 + $0x140] sm:$0xff]
    %v98 = vld [vmem:[#allocation3 + $0x148] sm:$0xff]
    %v99 = vld [vmem:[#allocation3 + $0x150] sm:$0xff]
    %v100 = vld [vmem:[#allocation3 + $0x158] sm:$0xff]
    %v101 = vld [vmem:[#allocation3 + $0x160] sm:$0xff]
    %v102 = vld [vmem:[#allocation3 + $0x168] sm:$0xff]
    %v103 = vld [vmem:[#allocation3 + $0x170] sm:$0xff]
    %v104 = vld [vmem:[#allocation3 + $0x178] sm:$0xff]
    %v105 = vld [vmem:[#allocation3 + $0x180] sm:$0xff]
    %v106 = vld [vmem:[#allocation3 + $0x188] sm:$0xff]
    %v107 = vld [vmem:[#allocation3 + $0x190] sm:$0xff]
    %v108 = vld [vmem:[#allocation3 + $0x198] sm:$0xff]
    %v109 = vld [vmem:[#allocation3 + $0x1a0] sm:$0xff]
    %v110 = vld [vmem:[#allocation3 + $0x1a8] sm:$0xff]
    %v111 = vld [vmem:[#allocation3 + $0x1b0] sm:$0xff]
    %v112 = vld [vmem:[#allocation3 + $0x1b8] sm:$0xff]
    %v113 = vld [vmem:[#allocation3 + $0x1c0] sm:$0xff]
    %v114 = vld [vmem:[#allocation3 + $0x1c8] sm:$0xff]
    %v115 = vld [vmem:[#allocation3 + $0x1d0] sm:$0xff]
    %v116 = vld [vmem:[#allocation3 + $0x1d8] sm:$0xff]
    %v117 = vld [vmem:[#allocation3 + $0x1e0] sm:$0xff]
    %v118 = vld [vmem:[#allocation3 + $0x1e8] sm:$0xff]
    %v119 = vld [vmem:[#allocation3 + $0x1f0] sm:$0xff]
    %v120 = vld [vmem:[#allocation3 + $0x1f8] sm:$0xff]
    %v121 = vld [vmem:[#allocation3 + $0x200] sm:$0xff]
    %v122 = vld [vmem:[#allocation3 + $0x208] sm:$0xff]
    %v123 = vld [vmem:[#allocation3 + $0x210] sm:$0xff]
    %v124 = vld [vmem:[#allocation3 + $0x218] sm:$0xff]
    %v125 = vld [vmem:[#allocation3 + $0x220] sm:$0xff]
    %v126 = vld [vmem:[#allocation3 + $0x228] sm:$0xff]
    %v127 = vld [vmem:[#allocation3 + $0x230] sm:$0xff]
    %v128 = vld [vmem:[#allocation3 + $0x238] sm:$0xff]
    %v129 = vld [vmem:[#allocation3 + $0x240] sm:$0xff]
    %v130 = vld [vmem:[#allocation3 + $0x248] sm:$0xff]
    %v131 = vld [vmem:[#allocation3 + $0x250] sm:$0xff]
    %v132 = vld [vmem:[#allocation3 + $0x258] sm:$0xff]
    %v133 = vld [vmem:[#allocation3 + $0x260] sm:$0xff]
    %v134 = vld [vmem:[#allocation3 + $0x268] sm:$0xff]
    %v135 = vld [vmem:[#allocation3 + $0x270] sm:$0xff]
    %v136 = vld [vmem:[#allocation3 + $0x278] sm:$0xff]
    %v137 = vld [vmem:[#allocation3 + $0x280] sm:$0xff]
    %v138 = vld [vmem:[#allocation3 + $0x288] sm:$0xff]
    %v139 = vld [vmem:[#allocation3 + $0x290] sm:$0xff]
    %v140 = vld [vmem:[#allocation3 + $0x298] sm:$0xff]
    %v141 = vld [vmem:[#allocation3 + $0x2a0] sm:$0xff]
    %v142 = vld [vmem:[#allocation3 + $0x2a8] sm:$0xff]
    %v143 = vld [vmem:[#allocation3 + $0x2b0] sm:$0xff]
    %v144 = vld [vmem:[#allocation3 + $0x2b8] sm:$0xff]
    %v145 = vld [vmem:[#allocation3 + $0x2c0] sm:$0xff]
    %v146 = vld [vmem:[#allocation3 + $0x2c8] sm:$0xff]
    %v147 = vld [vmem:[#allocation3 + $0x2d0] sm:$0xff]
    %v148 = vld [vmem:[#allocation3 + $0x2d8] sm:$0xff]
    %v149 = vld [vmem:[#allocation3 + $0x2e0] sm:$0xff]
    %v150 = vld [vmem:[#allocation3 + $0x2e8] sm:$0xff]
    %v151 = vld [vmem:[#allocation3 + $0x2f0] sm:$0xff]
    %v152 = vld [vmem:[#allocation3 + $0x2f8] sm:$0xff]
    %v153 = vld [vmem:[#allocation3 + $0x300] sm:$0xff]
    %v154 = vld [vmem:[#allocation3 + $0x308] sm:$0xff]
    %v155 = vld [vmem:[#allocation3 + $0x310] sm:$0xff]
    %v156 = vld [vmem:[#allocation3 + $0x318] sm:$0xff]
    %v157 = vld [vmem:[#allocation3 + $0x320] sm:$0xff]
    %v158 = vld [vmem:[#allocation3 + $0x328] sm:$0xff]
    %v159 = vld [vmem:[#allocation3 + $0x330] sm:$0xff]
    %v160 = vld [vmem:[#allocation3 + $0x338] sm:$0xff]
    %v161 = vld [vmem:[#allocation3 + $0x340] sm:$0xff]
    %v162 = vld [vmem:[#allocation3 + $0x348] sm:$0xff]
    %v163 = vld [vmem:[#allocation3 + $0x350] sm:$0xff]
    %v164 = vld [vmem:[#allocation3 + $0x358] sm:$0xff]
    %v165 = vld [vmem:[#allocation3 + $0x360] sm:$0xff]
    %v166 = vld [vmem:[#allocation3 + $0x368] sm:$0xff]
    %v167 = vld [vmem:[#allocation3 + $0x370] sm:$0xff]
    %v168 = vld [vmem:[#allocation3 + $0x378] sm:$0xff]
    %v169 = vld [vmem:[#allocation3 + $0x380] sm:$0xff]
    %v170 = vld [vmem:[#allocation3 + $0x388] sm:$0xff]
    %v171 = vld [vmem:[#allocation3 + $0x390] sm:$0xff]
    %v172 = vld [vmem:[#allocation3 + $0x398] sm:$0xff]
    %v173 = vld [vmem:[#allocation3 + $0x3a0] sm:$0xff]
    %v174 = vld [vmem:[#allocation3 + $0x3a8] sm:$0xff]
    %v175 = vld [vmem:[#allocation3 + $0x3b0] sm:$0xff]
    %v176 = vld [vmem:[#allocation3 + $0x3b8] sm:$0xff]
    %v177 = vld [vmem:[#allocation3 + $0x3c0] sm:$0xff]
    %v178 = vld [vmem:[#allocation3 + $0x3c8] sm:$0xff]
    %v179 = vld [vmem:[#allocation3 + $0x3d0] sm:$0xff]
    %v180 = vld [vmem:[#allocation3 + $0x3d8] sm:$0xff]
    %v181 = vld [vmem:[#allocation3 + $0x3e0] sm:$0xff]
    %v182 = vld [vmem:[#allocation3 + $0x3e8] sm:$0xff]
    %v183 = vld [vmem:[#allocation3 + $0x3f0] sm:$0xff]
    %v184 = vld [vmem:[#allocation3 + $0x3f8] sm:$0xff]
    %v185 = vld [vmem:[#allocation3 + $0x400] sm:$0xff]
    %v186 = vld [vmem:[#allocation3 + $0x408] sm:$0xff]
    %v187 = vld [vmem:[#allocation3 + $0x410] sm:$0xff]
    %v188 = vld [vmem:[#allocation3 + $0x418] sm:$0xff]
    %v189 = vld [vmem:[#allocation3 + $0x420] sm:$0xff]
    %v190 = vld [vmem:[#allocation3 + $0x428] sm:$0xff]
    %v191 = vld [vmem:[#allocation3 + $0x430] sm:$0xff]
    %v192 = vld [vmem:[#allocation3 + $0x438] sm:$0xff]
    %v193 = vld [vmem:[#allocation3 + $0x440] sm:$0xff]
    %v194 = vld [vmem:[#allocation3 + $0x448] sm:$0xff]
    %v195 = vld [vmem:[#allocation3 + $0x450] sm:$0xff]
    %v196 = vld [vmem:[#allocation3 + $0x458] sm:$0xff]
    %v197 = vld [vmem:[#allocation3 + $0x460] sm:$0xff]
    %v198 = vld [vmem:[#allocation3 + $0x468] sm:$0xff]
    %v199 = vld [vmem:[#allocation3 + $0x470] sm:$0xff]
    %v200 = vld [vmem:[#allocation3 + $0x478] sm:$0xff]
    %v201 = vld [vmem:[#allocation3 + $0x480] sm:$0xff]
    %v202 = vld [vmem:[#allocation3 + $0x488] sm:$0xff]
    %v203 = vld [vmem:[#allocation3 + $0x490] sm:$0xff]
    %v204 = vld [vmem:[#allocation3 + $0x498] sm:$0xff]
    %v205 = vld [vmem:[#allocation3 + $0x4a0] sm:$0xff]
    %v206 = vld [vmem:[#allocation3 + $0x4a8] sm:$0xff]
    %v207 = vld [vmem:[#allocation3 + $0x4b0] sm:$0xff]
    %v208 = vld [vmem:[#allocation3 + $0x4b8] sm:$0xff]
    %v209 = vld [vmem:[#allocation3 + $0x4c0] sm:$0xff]
    %v210 = vld [vmem:[#allocation3 + $0x4c8] sm:$0xff]
    %v211 = vld [vmem:[#allocation3 + $0x4d0] sm:$0xff]
    %v212 = vld [vmem:[#allocation3 + $0x4d8] sm:$0xff]
    %v213 = vld [vmem:[#allocation3 + $0x4e0] sm:$0xff]
    %v214 = vld [vmem:[#allocation3 + $0x4e8] sm:$0xff]
    %v215 = vld [vmem:[#allocation3 + $0x4f0] sm:$0xff]
    %v216 = vld [vmem:[#allocation3 + $0x4f8] sm:$0xff]
    %v217 = vld [vmem:[#allocation3 + $0x500] sm:$0xff]
    %v218 = vld [vmem:[#allocation3 + $0x508] sm:$0xff]
    %v219 = vld [vmem:[#allocation3 + $0x510] sm:$0xff]
    %v220 = vld [vmem:[#allocation3 + $0x518] sm:$0xff]
    %v221 = vld [vmem:[#allocation3 + $0x520] sm:$0xff]
    %v222 = vld [vmem:[#allocation3 + $0x528] sm:$0xff]
    %v223 = vld [vmem:[#allocation3 + $0x530] sm:$0xff]
    %v224 = vld [vmem:[#allocation3 + $0x538] sm:$0xff]
    %v225 = vld [vmem:[#allocation3 + $0x540] sm:$0xff]
    %v226 = vld [vmem:[#allocation3 + $0x548] sm:$0xff]
    %v227 = vld [vmem:[#allocation3 + $0x550] sm:$0xff]
    %v228 = vld [vmem:[#allocation3 + $0x558] sm:$0xff]
    %v229 = vld [vmem:[#allocation3 + $0x560] sm:$0xff]
    %v230 = vld [vmem:[#allocation3 + $0x568] sm:$0xff]
    %v231 = vld [vmem:[#allocation3 + $0x570] sm:$0xff]
    %v232 = vld [vmem:[#allocation3 + $0x578] sm:$0xff]
    %v233 = vld [vmem:[#allocation3 + $0x580] sm:$0xff]
    %v234 = vld [vmem:[#allocation3 + $0x588] sm:$0xff]
    %v235 = vld [vmem:[#allocation3 + $0x590] sm:$0xff]
    %v236 = vld [vmem:[#allocation3 + $0x598] sm:$0xff]
    %v237 = vld [vmem:[#allocation3 + $0x5a0] sm:$0xff]
    %v238 = vld [vmem:[#allocation3 + $0x5a8] sm:$0xff]
    %v239 = vld [vmem:[#allocation3 + $0x5b0] sm:$0xff]
    %v240 = vld [vmem:[#allocation3 + $0x5b8] sm:$0xff]
    %v241 = vld [vmem:[#allocation3 + $0x5c0] sm:$0xff]
    %v242 = vld [vmem:[#allocation3 + $0x5c8] sm:$0xff]
    %v243 = vld [vmem:[#allocation3 + $0x5d0] sm:$0xff]
    %v244 = vld [vmem:[#allocation3 + $0x5d8] sm:$0xff]
    %v245 = vld [vmem:[#allocation3 + $0x5e0] sm:$0xff]
    %v246 = vld [vmem:[#allocation3 + $0x5e8] sm:$0xff]
    %v247 = vld [vmem:[#allocation3 + $0x5f0] sm:$0xff]
    %v248 = vld [vmem:[#allocation3 + $0x5f8] sm:$0xff]
    %v249 = vld [vmem:[#allocation3 + $0x600] sm:$0xff]
    %v250 = vld [vmem:[#allocation3 + $0x608] sm:$0xff]
    %v251 = vld [vmem:[#allocation3 + $0x610] sm:$0xff]
    %v252 = vld [vmem:[#allocation3 + $0x618] sm:$0xff]
    %v253 = vld [vmem:[%s2] sm:$0xf]
    %v255 = vlaneseq
    %v256 = vshrl.u32 %v255, 7
    %v257 = vsub.s32 0, %v256
    %v258 = vrot.slane %v253, %v257
    %v259 = vlaneseq
    %v260 = vshrl.u32 %v259, 7
    %v261 = vsub.s32 1, %v260
    %v262 = vrot.slane %v253, %v261
    %v263 = vlaneseq
    %v264 = vshrl.u32 %v263, 7
    %v265 = vsub.s32 2, %v264
    %v266 = vrot.slane %v253, %v265
    %v267 = vlaneseq
    %v268 = vshrl.u32 %v267, 7
    %v269 = vsub.s32 3, %v268
    %v270 = vrot.slane %v253, %v269
    %v471 = vunpack.c.l.b16 %v57
    %v472 = vunpack.c.h.b16 %v57
    %v473 = vunpack.c.l.b16 %v58
    %v474 = vunpack.c.h.b16 %v58
    %v475 = vunpack.c.l.b16 %v59
    %v476 = vunpack.c.h.b16 %v59
    %v477 = vunpack.c.l.b16 %v60
    %v478 = vunpack.c.h.b16 %v60
    %v479 = vunpack.c.l.b16 %v61
    %v480 = vunpack.c.h.b16 %v61
    %v481 = vunpack.c.l.b16 %v62
    %v482 = vunpack.c.h.b16 %v62
    %v483 = vunpack.c.l.b16 %v63
    %v484 = vunpack.c.h.b16 %v63
    %v485 = vunpack.c.l.b16 %v64
    %v486 = vunpack.c.h.b16 %v64
    %v487 = vunpack.c.l.b16 %v65
    %v488 = vunpack.c.h.b16 %v65
    %v489 = vunpack.c.l.b16 %v66
    %v490 = vunpack.c.h.b16 %v66
    %v491 = vunpack.c.l.b16 %v67
    %v492 = vunpack.c.h.b16 %v67
    %v493 = vunpack.c.l.b16 %v68
    %v494 = vunpack.c.h.b16 %v68
    %v495 = vunpack.c.l.b16 %v69
    %v496 = vunpack.c.h.b16 %v69
    %v497 = vunpack.c.l.b16 %v70
    %v498 = vunpack.c.h.b16 %v70
    %v499 = vunpack.c.l.b16 %v71
    %v500 = vunpack.c.h.b16 %v71
    %v501 = vunpack.c.l.b16 %v72
    %v502 = vunpack.c.h.b16 %v72
    %v503 = vunpack.c.l.b16 %v73
    %v504 = vunpack.c.h.b16 %v73
    %v505 = vunpack.c.l.b16 %v74
    %v506 = vunpack.c.h.b16 %v74
    %v507 = vunpack.c.l.b16 %v75
    %v508 = vunpack.c.h.b16 %v75
    %v509 = vunpack.c.l.b16 %v76
    %v510 = vunpack.c.h.b16 %v76
    %v511 = vunpack.c.l.b16 %v77
    %v512 = vunpack.c.h.b16 %v77
    %v513 = vunpack.c.l.b16 %v78
    %v514 = vunpack.c.h.b16 %v78
    %v515 = vunpack.c.l.b16 %v79
    %v516 = vunpack.c.h.b16 %v79
    %v517 = vunpack.c.l.b16 %v80
    %v518 = vunpack.c.h.b16 %v80
    %v519 = vunpack.c.l.b16 %v81
    %v520 = vunpack.c.h.b16 %v81
    %v521 = vunpack.c.l.b16 %v82
    %v522 = vunpack.c.h.b16 %v82
    %v523 = vunpack.c.l.b16 %v83
    %v524 = vunpack.c.h.b16 %v83
    %v525 = vunpack.c.l.b16 %v84
    %v526 = vunpack.c.h.b16 %v84
    %v527 = vunpack.c.l.b16 %v85
    %v528 = vunpack.c.h.b16 %v85
    %v529 = vunpack.c.l.b16 %v86
    %v530 = vunpack.c.h.b16 %v86
    %v531 = vunpack.c.l.b16 %v87
    %v532 = vunpack.c.h.b16 %v87
    %v533 = vunpack.c.l.b16 %v88
    %v534 = vunpack.c.h.b16 %v88
    %v535 = vunpack.c.l.b16 %v89
    %v536 = vunpack.c.h.b16 %v89
    %v537 = vunpack.c.l.b16 %v90
    %v538 = vunpack.c.h.b16 %v90
    %v539 = vunpack.c.l.b16 %v91
    %v540 = vunpack.c.h.b16 %v91
    %v541 = vunpack.c.l.b16 %v92
    %v542 = vunpack.c.h.b16 %v92
    %v543 = vunpack.c.l.b16 %v93
    %v544 = vunpack.c.h.b16 %v93
    %v545 = vunpack.c.l.b16 %v94
    %v546 = vunpack.c.h.b16 %v94
    %v547 = vunpack.c.l.b16 %v95
    %v548 = vunpack.c.h.b16 %v95
    %v549 = vunpack.c.l.b16 %v96
    %v550 = vunpack.c.h.b16 %v96
    %v551 = vunpack.c.l.b16 %v97
    %v552 = vunpack.c.h.b16 %v97
    %v553 = vunpack.c.l.b16 %v98
    %v554 = vunpack.c.h.b16 %v98
    %v555 = vunpack.c.l.b16 %v99
    %v556 = vunpack.c.h.b16 %v99
    %v557 = vunpack.c.l.b16 %v100
    %v558 = vunpack.c.h.b16 %v100
    %v559 = vunpack.c.l.b16 %v101
    %v560 = vunpack.c.h.b16 %v101
    %v561 = vunpack.c.l.b16 %v102
    %v562 = vunpack.c.h.b16 %v102
    %v563 = vunpack.c.l.b16 %v103
    %v564 = vunpack.c.h.b16 %v103
    %v565 = vunpack.c.l.b16 %v104
    %v566 = vunpack.c.h.b16 %v104
    %v567 = vunpack.c.l.b16 %v105
    %v568 = vunpack.c.h.b16 %v105
    %v569 = vunpack.c.l.b16 %v106
    %v570 = vunpack.c.h.b16 %v106
    %v571 = vunpack.c.l.b16 %v107
    %v572 = vunpack.c.h.b16 %v107
    %v573 = vunpack.c.l.b16 %v108
    %v574 = vunpack.c.h.b16 %v108
    %v575 = vunpack.c.l.b16 %v109
    %v576 = vunpack.c.h.b16 %v109
    %v577 = vunpack.c.l.b16 %v110
    %v578 = vunpack.c.h.b16 %v110
    %v579 = vunpack.c.l.b16 %v111
    %v580 = vunpack.c.h.b16 %v111
    %v581 = vunpack.c.l.b16 %v112
    %v582 = vunpack.c.h.b16 %v112
    %v583 = vunpack.c.l.b16 %v113
    %v584 = vunpack.c.h.b16 %v113
    %v585 = vunpack.c.l.b16 %v114
    %v586 = vunpack.c.h.b16 %v114
    %v587 = vunpack.c.l.b16 %v115
    %v588 = vunpack.c.h.b16 %v115
    %v589 = vunpack.c.l.b16 %v116
    %v590 = vunpack.c.h.b16 %v116
    %v591 = vunpack.c.l.b16 %v117
    %v592 = vunpack.c.h.b16 %v117
    %v593 = vunpack.c.l.b16 %v118
    %v594 = vunpack.c.h.b16 %v118
    %v595 = vunpack.c.l.b16 %v119
    %v596 = vunpack.c.h.b16 %v119
    %v597 = vunpack.c.l.b16 %v120
    %v598 = vunpack.c.h.b16 %v120
    %v599 = vunpack.c.l.b16 %v121
    %v600 = vunpack.c.h.b16 %v121
    %v601 = vunpack.c.l.b16 %v122
    %v602 = vunpack.c.h.b16 %v122
    %v603 = vunpack.c.l.b16 %v123
    %v604 = vunpack.c.h.b16 %v123
    %v605 = vunpack.c.l.b16 %v124
    %v606 = vunpack.c.h.b16 %v124
    %v607 = vunpack.c.l.b16 %v125
    %v608 = vunpack.c.h.b16 %v125
    %v609 = vunpack.c.l.b16 %v126
    %v610 = vunpack.c.h.b16 %v126
    %v611 = vunpack.c.l.b16 %v127
    %v612 = vunpack.c.h.b16 %v127
    %v613 = vunpack.c.l.b16 %v128
    %v614 = vunpack.c.h.b16 %v128
    %v615 = vunpack.c.l.b16 %v129
    %v616 = vunpack.c.h.b16 %v129
    %v617 = vunpack.c.l.b16 %v130
    %v618 = vunpack.c.h.b16 %v130
    %v619 = vunpack.c.l.b16 %v131
    %v620 = vunpack.c.h.b16 %v131
    %v621 = vunpack.c.l.b16 %v132
    %v622 = vunpack.c.h.b16 %v132
    %v623 = vunpack.c.l.b16 %v133
    %v624 = vunpack.c.h.b16 %v133
    %v625 = vunpack.c.l.b16 %v134
    %v626 = vunpack.c.h.b16 %v134
    %v627 = vunpack.c.l.b16 %v135
    %v628 = vunpack.c.h.b16 %v135
    %v629 = vunpack.c.l.b16 %v136
    %v630 = vunpack.c.h.b16 %v136
    %v631 = vunpack.c.l.b16 %v137
    %v632 = vunpack.c.h.b16 %v137
    %v633 = vunpack.c.l.b16 %v138
    %v634 = vunpack.c.h.b16 %v138
    %v635 = vunpack.c.l.b16 %v139
    %v636 = vunpack.c.h.b16 %v139
    %v637 = vunpack.c.l.b16 %v140
    %v638 = vunpack.c.h.b16 %v140
    %v639 = vunpack.c.l.b16 %v141
    %v640 = vunpack.c.h.b16 %v141
    %v641 = vunpack.c.l.b16 %v142
    %v642 = vunpack.c.h.b16 %v142
    %v643 = vunpack.c.l.b16 %v143
    %v644 = vunpack.c.h.b16 %v143
    %v645 = vunpack.c.l.b16 %v144
    %v646 = vunpack.c.h.b16 %v144
    %v647 = vunpack.c.l.b16 %v145
    %v648 = vunpack.c.h.b16 %v145
    %v649 = vunpack.c.l.b16 %v146
    %v650 = vunpack.c.h.b16 %v146
    %v651 = vunpack.c.l.b16 %v147
    %v652 = vunpack.c.h.b16 %v147
    %v653 = vunpack.c.l.b16 %v148
    %v654 = vunpack.c.h.b16 %v148
    %v655 = vunpack.c.l.b16 %v149
    %v656 = vunpack.c.h.b16 %v149
    %v657 = vunpack.c.l.b16 %v150
    %v658 = vunpack.c.h.b16 %v150
    %v659 = vunpack.c.l.b16 %v151
    %v660 = vunpack.c.h.b16 %v151
    %v661 = vunpack.c.l.b16 %v152
    %v662 = vunpack.c.h.b16 %v152
    %v663 = vunpack.c.l.b16 %v153
    %v664 = vunpack.c.h.b16 %v153
    %v665 = vunpack.c.l.b16 %v154
    %v666 = vunpack.c.h.b16 %v154
    %v667 = vunpack.c.l.b16 %v155
    %v668 = vunpack.c.h.b16 %v155
    %v669 = vunpack.c.l.b16 %v156
    %v670 = vunpack.c.h.b16 %v156
    %v671 = vunpack.c.l.b16 %v157
    %v672 = vunpack.c.h.b16 %v157
    %v673 = vunpack.c.l.b16 %v158
    %v674 = vunpack.c.h.b16 %v158
    %v675 = vunpack.c.l.b16 %v159
    %v676 = vunpack.c.h.b16 %v159
    %v677 = vunpack.c.l.b16 %v160
    %v678 = vunpack.c.h.b16 %v160
    %v679 = vunpack.c.l.b16 %v161
    %v680 = vunpack.c.h.b16 %v161
    %v681 = vunpack.c.l.b16 %v162
    %v682 = vunpack.c.h.b16 %v162
    %v683 = vunpack.c.l.b16 %v163
    %v684 = vunpack.c.h.b16 %v163
    %v685 = vunpack.c.l.b16 %v164
    %v686 = vunpack.c.h.b16 %v164
    %v687 = vunpack.c.l.b16 %v165
    %v688 = vunpack.c.h.b16 %v165
    %v689 = vunpack.c.l.b16 %v166
    %v690 = vunpack.c.h.b16 %v166
    %v691 = vunpack.c.l.b16 %v167
    %v692 = vunpack.c.h.b16 %v167
    %v693 = vunpack.c.l.b16 %v168
    %v694 = vunpack.c.h.b16 %v168
    %v695 = vunpack.c.l.b16 %v169
    %v696 = vunpack.c.h.b16 %v169
    %v697 = vunpack.c.l.b16 %v170
    %v698 = vunpack.c.h.b16 %v170
    %v699 = vunpack.c.l.b16 %v171
    %v700 = vunpack.c.h.b16 %v171
    %v701 = vunpack.c.l.b16 %v172
    %v702 = vunpack.c.h.b16 %v172
    %v703 = vunpack.c.l.b16 %v173
    %v704 = vunpack.c.h.b16 %v173
    %v705 = vunpack.c.l.b16 %v174
    %v706 = vunpack.c.h.b16 %v174
    %v707 = vunpack.c.l.b16 %v175
    %v708 = vunpack.c.h.b16 %v175
    %v709 = vunpack.c.l.b16 %v176
    %v710 = vunpack.c.h.b16 %v176
    %v711 = vunpack.c.l.b16 %v177
    %v712 = vunpack.c.h.b16 %v177
    %v713 = vunpack.c.l.b16 %v178
    %v714 = vunpack.c.h.b16 %v178
    %v715 = vunpack.c.l.b16 %v179
    %v716 = vunpack.c.h.b16 %v179
    %v717 = vunpack.c.l.b16 %v180
    %v718 = vunpack.c.h.b16 %v180
    %v719 = vunpack.c.l.b16 %v181
    %v720 = vunpack.c.h.b16 %v181
    %v721 = vunpack.c.l.b16 %v182
    %v722 = vunpack.c.h.b16 %v182
    %v723 = vunpack.c.l.b16 %v183
    %v724 = vunpack.c.h.b16 %v183
    %v725 = vunpack.c.l.b16 %v184
    %v726 = vunpack.c.h.b16 %v184
    %v727 = vunpack.c.l.b16 %v185
    %v728 = vunpack.c.h.b16 %v185
    %v729 = vunpack.c.l.b16 %v186
    %v730 = vunpack.c.h.b16 %v186
    %v731 = vunpack.c.l.b16 %v187
    %v732 = vunpack.c.h.b16 %v187
    %v733 = vunpack.c.l.b16 %v188
    %v734 = vunpack.c.h.b16 %v188
    %v735 = vunpack.c.l.b16 %v189
    %v736 = vunpack.c.h.b16 %v189
    %v737 = vunpack.c.l.b16 %v190
    %v738 = vunpack.c.h.b16 %v190
    %v739 = vunpack.c.l.b16 %v191
    %v740 = vunpack.c.h.b16 %v191
    %v741 = vunpack.c.l.b16 %v192
    %v742 = vunpack.c.h.b16 %v192
    %v743 = vunpack.c.l.b16 %v193
    %v744 = vunpack.c.h.b16 %v193
    %v745 = vunpack.c.l.b16 %v194
    %v746 = vunpack.c.h.b16 %v194
    %v747 = vunpack.c.l.b16 %v195
    %v748 = vunpack.c.h.b16 %v195
    %v749 = vunpack.c.l.b16 %v196
    %v750 = vunpack.c.h.b16 %v196
    %v751 = vunpack.c.l.b16 %v197
    %v752 = vunpack.c.h.b16 %v197
    %v753 = vunpack.c.l.b16 %v198
    %v754 = vunpack.c.h.b16 %v198
    %v755 = vunpack.c.l.b16 %v199
    %v756 = vunpack.c.h.b16 %v199
    %v757 = vunpack.c.l.b16 %v200
    %v758 = vunpack.c.h.b16 %v200
    %v759 = vunpack.c.l.b16 %v201
    %v760 = vunpack.c.h.b16 %v201
    %v761 = vunpack.c.l.b16 %v202
    %v762 = vunpack.c.h.b16 %v202
    %v763 = vunpack.c.l.b16 %v203
    %v764 = vunpack.c.h.b16 %v203
    %v765 = vunpack.c.l.b16 %v204
    %v766 = vunpack.c.h.b16 %v204
    %v767 = vunpack.c.l.b16 %v205
    %v768 = vunpack.c.h.b16 %v205
    %v769 = vunpack.c.l.b16 %v206
    %v770 = vunpack.c.h.b16 %v206
    %v771 = vunpack.c.l.b16 %v207
    %v772 = vunpack.c.h.b16 %v207
    %v773 = vunpack.c.l.b16 %v208
    %v774 = vunpack.c.h.b16 %v208
    %v775 = vunpack.c.l.b16 %v209
    %v776 = vunpack.c.h.b16 %v209
    %v777 = vunpack.c.l.b16 %v210
    %v778 = vunpack.c.h.b16 %v210
    %v779 = vunpack.c.l.b16 %v211
    %v780 = vunpack.c.h.b16 %v211
    %v781 = vunpack.c.l.b16 %v212
    %v782 = vunpack.c.h.b16 %v212
    %v783 = vunpack.c.l.b16 %v213
    %v784 = vunpack.c.h.b16 %v213
    %v785 = vunpack.c.l.b16 %v214
    %v786 = vunpack.c.h.b16 %v214
    %v787 = vunpack.c.l.b16 %v215
    %v788 = vunpack.c.h.b16 %v215
    %v789 = vunpack.c.l.b16 %v216
    %v790 = vunpack.c.h.b16 %v216
    %v791 = vunpack.c.l.b16 %v217
    %v792 = vunpack.c.h.b16 %v217
    %v793 = vunpack.c.l.b16 %v218
    %v794 = vunpack.c.h.b16 %v218
    %v795 = vunpack.c.l.b16 %v219
    %v796 = vunpack.c.h.b16 %v219
    %v797 = vunpack.c.l.b16 %v220
    %v798 = vunpack.c.h.b16 %v220
    %v799 = vunpack.c.l.b16 %v221
    %v800 = vunpack.c.h.b16 %v221
    %v801 = vunpack.c.l.b16 %v222
    %v802 = vunpack.c.h.b16 %v222
    %v803 = vunpack.c.l.b16 %v223
    %v804 = vunpack.c.h.b16 %v223
    %v805 = vunpack.c.l.b16 %v224
    %v806 = vunpack.c.h.b16 %v224
    %v807 = vunpack.c.l.b16 %v225
    %v808 = vunpack.c.h.b16 %v225
    %v809 = vunpack.c.l.b16 %v226
    %v810 = vunpack.c.h.b16 %v226
    %v811 = vunpack.c.l.b16 %v227
    %v812 = vunpack.c.h.b16 %v227
    %v813 = vunpack.c.l.b16 %v228
    %v814 = vunpack.c.h.b16 %v228
    %v815 = vunpack.c.l.b16 %v229
    %v816 = vunpack.c.h.b16 %v229
    %v817 = vunpack.c.l.b16 %v230
    %v818 = vunpack.c.h.b16 %v230
    %v819 = vunpack.c.l.b16 %v231
    %v820 = vunpack.c.h.b16 %v231
    %v821 = vunpack.c.l.b16 %v232
    %v822 = vunpack.c.h.b16 %v232
    %v823 = vunpack.c.l.b16 %v233
    %v824 = vunpack.c.h.b16 %v233
    %v825 = vunpack.c.l.b16 %v234
    %v826 = vunpack.c.h.b16 %v234
    %v827 = vunpack.c.l.b16 %v235
    %v828 = vunpack.c.h.b16 %v235
    %v829 = vunpack.c.l.b16 %v236
    %v830 = vunpack.c.h.b16 %v236
    %v831 = vunpack.c.l.b16 %v237
    %v832 = vunpack.c.h.b16 %v237
    %v833 = vunpack.c.l.b16 %v238
    %v834 = vunpack.c.h.b16 %v238
    %v835 = vunpack.c.l.b16 %v239
    %v836 = vunpack.c.h.b16 %v239
    %v837 = vunpack.c.l.b16 %v240
    %v838 = vunpack.c.h.b16 %v240
    %v839 = vunpack.c.l.b16 %v241
    %v840 = vunpack.c.h.b16 %v241
    %v841 = vunpack.c.l.b16 %v242
    %v842 = vunpack.c.h.b16 %v242
    %v843 = vunpack.c.l.b16 %v243
    %v844 = vunpack.c.h.b16 %v243
    %v845 = vunpack.c.l.b16 %v244
    %v846 = vunpack.c.h.b16 %v244
    %v847 = vunpack.c.l.b16 %v245
    %v848 = vunpack.c.h.b16 %v245
    %v849 = vunpack.c.l.b16 %v246
    %v850 = vunpack.c.h.b16 %v246
    %v851 = vunpack.c.l.b16 %v247
    %v852 = vunpack.c.h.b16 %v247
    %v853 = vunpack.c.l.b16 %v248
    %v854 = vunpack.c.h.b16 %v248
    %v855 = vunpack.c.l.b16 %v249
    %v856 = vunpack.c.h.b16 %v249
    %v857 = vunpack.c.l.b16 %v250
    %v858 = vunpack.c.h.b16 %v250
    %v859 = vunpack.c.l.b16 %v251
    %v860 = vunpack.c.h.b16 %v251
    %v861 = vunpack.c.l.b16 %v252
    %v862 = vunpack.c.h.b16 %v252
    %v863 = vpack.c.b16 %v475, %v471
    %v864 = vpack.c.b16 %v476, %v472
    %v865 = vpack.c.b16 %v477, %v473
    %v866 = vpack.c.b16 %v478, %v474
    %v867 = vpack.c.b16 %v483, %v479
    %v868 = vpack.c.b16 %v484, %v480
    %v869 = vpack.c.b16 %v485, %v481
    %v870 = vpack.c.b16 %v486, %v482
    %v871 = vpack.c.b16 %v491, %v487
    %v872 = vpack.c.b16 %v492, %v488
    %v873 = vpack.c.b16 %v493, %v489
    %v874 = vpack.c.b16 %v494, %v490
    %v875 = vpack.c.b16 %v499, %v495
    %v876 = vpack.c.b16 %v500, %v496
    %v877 = vpack.c.b16 %v501, %v497
    %v878 = vpack.c.b16 %v502, %v498
    %v879 = vpack.c.b16 %v507, %v503
    %v880 = vpack.c.b16 %v508, %v504
    %v881 = vpack.c.b16 %v509, %v505
    %v882 = vpack.c.b16 %v510, %v506
    %v883 = vpack.c.b16 %v515, %v511
    %v884 = vpack.c.b16 %v516, %v512
    %v885 = vpack.c.b16 %v517, %v513
    %v886 = vpack.c.b16 %v518, %v514
    %v887 = vpack.c.b16 %v523, %v519
    %v888 = vpack.c.b16 %v524, %v520
    %v889 = vpack.c.b16 %v525, %v521
    %v890 = vpack.c.b16 %v526, %v522
    %v891 = vpack.c.b16 %v531, %v527
    %v892 = vpack.c.b16 %v532, %v528
    %v893 = vpack.c.b16 %v533, %v529
    %v894 = vpack.c.b16 %v534, %v530
    %v895 = vpack.c.b16 %v539, %v535
    %v896 = vpack.c.b16 %v540, %v536
    %v897 = vpack.c.b16 %v541, %v537
    %v898 = vpack.c.b16 %v542, %v538
    %v899 = vpack.c.b16 %v547, %v543
    %v900 = vpack.c.b16 %v548, %v544
    %v901 = vpack.c.b16 %v549, %v545
    %v902 = vpack.c.b16 %v550, %v546
    %v903 = vpack.c.b16 %v555, %v551
    %v904 = vpack.c.b16 %v556, %v552
    %v905 = vpack.c.b16 %v557, %v553
    %v906 = vpack.c.b16 %v558, %v554
    %v907 = vpack.c.b16 %v563, %v559
    %v908 = vpack.c.b16 %v564, %v560
    %v909 = vpack.c.b16 %v565, %v561
    %v910 = vpack.c.b16 %v566, %v562
    %v911 = vpack.c.b16 %v571, %v567
    %v912 = vpack.c.b16 %v572, %v568
    %v913 = vpack.c.b16 %v573, %v569
    %v914 = vpack.c.b16 %v574, %v570
    %v915 = vpack.c.b16 %v579, %v575
    %v916 = vpack.c.b16 %v580, %v576
    %v917 = vpack.c.b16 %v581, %v577
    %v918 = vpack.c.b16 %v582, %v578
    %v919 = vpack.c.b16 %v587, %v583
    %v920 = vpack.c.b16 %v588, %v584
    %v921 = vpack.c.b16 %v589, %v585
    %v922 = vpack.c.b16 %v590, %v586
    %v923 = vpack.c.b16 %v595, %v591
    %v924 = vpack.c.b16 %v596, %v592
    %v925 = vpack.c.b16 %v597, %v593
    %v926 = vpack.c.b16 %v598, %v594
    %v927 = vpack.c.b16 %v603, %v599
    %v928 = vpack.c.b16 %v604, %v600
    %v929 = vpack.c.b16 %v605, %v601
    %v930 = vpack.c.b16 %v606, %v602
    %v931 = vpack.c.b16 %v611, %v607
    %v932 = vpack.c.b16 %v612, %v608
    %v933 = vpack.c.b16 %v613, %v609
    %v934 = vpack.c.b16 %v614, %v610
    %v935 = vpack.c.b16 %v619, %v615
    %v936 = vpack.c.b16 %v620, %v616
    %v937 = vpack.c.b16 %v621, %v617
    %v938 = vpack.c.b16 %v622, %v618
    %v939 = vpack.c.b16 %v627, %v623
    %v940 = vpack.c.b16 %v628, %v624
    %v941 = vpack.c.b16 %v629, %v625
    %v942 = vpack.c.b16 %v630, %v626
    %v943 = vpack.c.b16 %v635, %v631
    %v944 = vpack.c.b16 %v636, %v632
    %v945 = vpack.c.b16 %v637, %v633
    %v946 = vpack.c.b16 %v638, %v634
    %v947 = vpack.c.b16 %v643, %v639
    %v948 = vpack.c.b16 %v644, %v640
    %v949 = vpack.c.b16 %v645, %v641
    %v950 = vpack.c.b16 %v646, %v642
    %v951 = vpack.c.b16 %v651, %v647
    %v952 = vpack.c.b16 %v652, %v648
    %v953 = vpack.c.b16 %v653, %v649
    %v954 = vpack.c.b16 %v654, %v650
    %v955 = vpack.c.b16 %v659, %v655
    %v956 = vpack.c.b16 %v660, %v656
    %v957 = vpack.c.b16 %v661, %v657
    %v958 = vpack.c.b16 %v662, %v658
    %v959 = vpack.c.b16 %v667, %v663
    %v960 = vpack.c.b16 %v668, %v664
    %v961 = vpack.c.b16 %v669, %v665
    %v962 = vpack.c.b16 %v670, %v666
    %v963 = vpack.c.b16 %v675, %v671
    %v964 = vpack.c.b16 %v676, %v672
    %v965 = vpack.c.b16 %v677, %v673
    %v966 = vpack.c.b16 %v678, %v674
    %v967 = vpack.c.b16 %v683, %v679
    %v968 = vpack.c.b16 %v684, %v680
    %v969 = vpack.c.b16 %v685, %v681
    %v970 = vpack.c.b16 %v686, %v682
    %v971 = vpack.c.b16 %v691, %v687
    %v972 = vpack.c.b16 %v692, %v688
    %v973 = vpack.c.b16 %v693, %v689
    %v974 = vpack.c.b16 %v694, %v690
    %v975 = vpack.c.b16 %v699, %v695
    %v976 = vpack.c.b16 %v700, %v696
    %v977 = vpack.c.b16 %v701, %v697
    %v978 = vpack.c.b16 %v702, %v698
    %v979 = vpack.c.b16 %v707, %v703
    %v980 = vpack.c.b16 %v708, %v704
    %v981 = vpack.c.b16 %v709, %v705
    %v982 = vpack.c.b16 %v710, %v706
    %v983 = vpack.c.b16 %v715, %v711
    %v984 = vpack.c.b16 %v716, %v712
    %v985 = vpack.c.b16 %v717, %v713
    %v986 = vpack.c.b16 %v718, %v714
    %v987 = vpack.c.b16 %v723, %v719
    %v988 = vpack.c.b16 %v724, %v720
    %v989 = vpack.c.b16 %v725, %v721
    %v990 = vpack.c.b16 %v726, %v722
    %v991 = vpack.c.b16 %v731, %v727
    %v992 = vpack.c.b16 %v732, %v728
    %v993 = vpack.c.b16 %v733, %v729
    %v994 = vpack.c.b16 %v734, %v730
    %v995 = vpack.c.b16 %v739, %v735
    %v996 = vpack.c.b16 %v740, %v736
    %v997 = vpack.c.b16 %v741, %v737
    %v998 = vpack.c.b16 %v742, %v738
    %v999 = vpack.c.b16 %v747, %v743
    %v1000 = vpack.c.b16 %v748, %v744
    %v1001 = vpack.c.b16 %v749, %v745
    %v1002 = vpack.c.b16 %v750, %v746
    %v1003 = vpack.c.b16 %v755, %v751
    %v1004 = vpack.c.b16 %v756, %v752
    %v1005 = vpack.c.b16 %v757, %v753
    %v1006 = vpack.c.b16 %v758, %v754
    %v1007 = vpack.c.b16 %v763, %v759
    %v1008 = vpack.c.b16 %v764, %v760
    %v1009 = vpack.c.b16 %v765, %v761
    %v1010 = vpack.c.b16 %v766, %v762
    %v1011 = vpack.c.b16 %v771, %v767
    %v1012 = vpack.c.b16 %v772, %v768
    %v1013 = vpack.c.b16 %v773, %v769
    %v1014 = vpack.c.b16 %v774, %v770
    %v1015 = vpack.c.b16 %v779, %v775
    %v1016 = vpack.c.b16 %v780, %v776
    %v1017 = vpack.c.b16 %v781, %v777
    %v1018 = vpack.c.b16 %v782, %v778
    %v1019 = vpack.c.b16 %v787, %v783
    %v1020 = vpack.c.b16 %v788, %v784
    %v1021 = vpack.c.b16 %v789, %v785
    %v1022 = vpack.c.b16 %v790, %v786
    %v1023 = vpack.c.b16 %v795, %v791
    %v1024 = vpack.c.b16 %v796, %v792
    %v1025 = vpack.c.b16 %v797, %v793
    %v1026 = vpack.c.b16 %v798, %v794
    %v1027 = vpack.c.b16 %v803, %v799
    %v1028 = vpack.c.b16 %v804, %v800
    %v1029 = vpack.c.b16 %v805, %v801
    %v1030 = vpack.c.b16 %v806, %v802
    %v1031 = vpack.c.b16 %v811, %v807
    %v1032 = vpack.c.b16 %v812, %v808
    %v1033 = vpack.c.b16 %v813, %v809
    %v1034 = vpack.c.b16 %v814, %v810
    %v1035 = vpack.c.b16 %v819, %v815
    %v1036 = vpack.c.b16 %v820, %v816
    %v1037 = vpack.c.b16 %v821, %v817
    %v1038 = vpack.c.b16 %v822, %v818
    %v1039 = vpack.c.b16 %v827, %v823
    %v1040 = vpack.c.b16 %v828, %v824
    %v1041 = vpack.c.b16 %v829, %v825
    %v1042 = vpack.c.b16 %v830, %v826
    %v1043 = vpack.c.b16 %v835, %v831
    %v1044 = vpack.c.b16 %v836, %v832
    %v1045 = vpack.c.b16 %v837, %v833
    %v1046 = vpack.c.b16 %v838, %v834
    %v1047 = vpack.c.b16 %v843, %v839
    %v1048 = vpack.c.b16 %v844, %v840
    %v1049 = vpack.c.b16 %v845, %v841
    %v1050 = vpack.c.b16 %v846, %v842
    %v1051 = vpack.c.b16 %v851, %v847
    %v1052 = vpack.c.b16 %v852, %v848
    %v1053 = vpack.c.b16 %v853, %v849
    %v1054 = vpack.c.b16 %v854, %v850
    %v1055 = vpack.c.b16 %v859, %v855
    %v1056 = vpack.c.b16 %v860, %v856
    %v1057 = vpack.c.b16 %v861, %v857
    %v1058 = vpack.c.b16 %v862, %v858
    %vm1255 = vcmask 130048
    %v1257 = vsel %vm1255, %v56, 0
    %1259 = vmatprep.subr.bf16.mxu0 %v864
    %1260 = vmatpush1.bf16.msra.mxu0 %v863
    %1261 = vmatprep.subr.bf16.mxu0 %v868
    %1262 = vmatpush1.bf16.msra.mxu0 %v867
    %1263 = vmatprep.subr.bf16.mxu0 %v872
    %1264 = vmatpush1.bf16.msra.mxu0 %v871
    %1265 = vmatprep.subr.bf16.mxu0 %v876
    %1266 = vmatpush1.bf16.msra.mxu0 %v875
    %1267 = vmatprep.subr.bf16.mxu0 %v880
    %1268 = vmatpush1.bf16.msra.mxu0 %v879
    %1269 = vmatprep.subr.bf16.mxu0 %v884
    %1270 = vmatpush1.bf16.msra.mxu0 %v883
    %1271 = vmatprep.subr.bf16.mxu0 %v888
    %1272 = vmatpush1.bf16.msra.mxu0 %v887
    %1273 = vmatprep.subr.bf16.mxu0 %v892
    %1274 = vmatpush1.bf16.msra.mxu0 %v891
    %1275 = vmatprep.subr.bf16.mxu0 %v896
    %1276 = vmatpush1.bf16.msra.mxu0 %v895
    %1277 = vmatprep.subr.bf16.mxu0 %v900
    %1278 = vmatpush1.bf16.msra.mxu0 %v899
    %1279 = vmatprep.subr.bf16.mxu0 %v904
    %1280 = vmatpush1.bf16.msra.mxu0 %v903
    %1281 = vmatprep.subr.bf16.mxu0 %v908
    %1282 = vmatpush1.bf16.msra.mxu0 %v907
    %1283 = vmatprep.subr.bf16.mxu0 %v912
    %1284 = vmatpush1.bf16.msra.mxu0 %v911
    %1285 = vmatprep.subr.bf16.mxu0 %v916
    %1286 = vmatpush1.bf16.msra.mxu0 %v915
    %1287 = vmatprep.subr.bf16.mxu0 %v920
    %1288 = vmatpush1.bf16.msra.mxu0 %v919
    %1289 = vmatprep.subr.bf16.mxu0 %v924
    %1290 = vmatpush1.bf16.msra.mxu0 %v923
    %1291 = vmatprep.mubr.bf16.mxu0 %v51
    %1292 = vmatmul.mubr.bf16.gmra.mrb[0].mxu0 %v50
    %v1293 = vpop.f32.mrb[0].mxu0
    %v1294 = vadd.f32 %v258, %v1293
    %v1295 = vpop.f32.mrb[0].mxu0
    %v1296 = vadd.f32 %v262, %v1295
    %v1297 = vpop.f32.mrb[0].mxu0
    %v1298 = vpop.f32.mrb[0].mxu0
    %1299 = vdwg.mxu0
    %1300 = vmatprep.subr.bf16.mxu0 %v928
    %1301 = vmatpush1.bf16.msra.mxu0 %v927
    %1302 = vmatprep.subr.bf16.mxu0 %v932
    %1303 = vmatpush1.bf16.msra.mxu0 %v931
    %1304 = vmatprep.subr.bf16.mxu0 %v936
    %1305 = vmatpush1.bf16.msra.mxu0 %v935
    %1306 = vmatprep.subr.bf16.mxu0 %v940
    %1307 = vmatpush1.bf16.msra.mxu0 %v939
    %1308 = vmatprep.subr.bf16.mxu0 %v944
    %1309 = vmatpush1.bf16.msra.mxu0 %v943
    %1310 = vmatprep.subr.bf16.mxu0 %v948
    %1311 = vmatpush1.bf16.msra.mxu0 %v947
    %1312 = vmatprep.subr.bf16.mxu0 %v952
    %1313 = vmatpush1.bf16.msra.mxu0 %v951
    %1314 = vmatprep.subr.bf16.mxu0 %v956
    %1315 = vmatpush1.bf16.msra.mxu0 %v955
    %1316 = vmatprep.subr.bf16.mxu0 %v960
    %1317 = vmatpush1.bf16.msra.mxu0 %v959
    %1318 = vmatprep.subr.bf16.mxu0 %v964
    %1319 = vmatpush1.bf16.msra.mxu0 %v963
    %1320 = vmatprep.subr.bf16.mxu0 %v968
    %1321 = vmatpush1.bf16.msra.mxu0 %v967
    %1322 = vmatprep.subr.bf16.mxu0 %v972
    %1323 = vmatpush1.bf16.msra.mxu0 %v971
    %1324 = vmatprep.subr.bf16.mxu0 %v976
    %1325 = vmatpush1.bf16.msra.mxu0 %v975
    %1326 = vmatprep.subr.bf16.mxu0 %v980
    %1327 = vmatpush1.bf16.msra.mxu0 %v979
    %1328 = vmatprep.subr.bf16.mxu0 %v984
    %1329 = vmatpush1.bf16.msra.mxu0 %v983
    %1330 = vmatprep.subr.bf16.mxu0 %v988
    %1331 = vmatpush1.bf16.msra.mxu0 %v987
    %1332 = vmatprep.mubr.bf16.mxu0 %v53
    %1333 = vmatmul.mubr.bf16.gmra.mrb[0].mxu0 %v52
    %v1334 = vpop.f32.mrb[0].mxu0
    %v1335 = vadd.f32 %v1294, %v1334
    %v1336 = vpop.f32.mrb[0].mxu0
    %v1337 = vadd.f32 %v1296, %v1336
    %v1338 = vpop.f32.mrb[0].mxu0
    %v1339 = vpop.f32.mrb[0].mxu0
    %1340 = vdwg.mxu0
    %1341 = vmatprep.subr.bf16.mxu0 %v992
    %1342 = vmatpush1.bf16.msra.mxu0 %v991
    %1343 = vmatprep.subr.bf16.mxu0 %v996
    %1344 = vmatpush1.bf16.msra.mxu0 %v995
    %1345 = vmatprep.subr.bf16.mxu0 %v1000
    %1346 = vmatpush1.bf16.msra.mxu0 %v999
    %1347 = vmatprep.subr.bf16.mxu0 %v1004
    %1348 = vmatpush1.bf16.msra.mxu0 %v1003
    %1349 = vmatprep.subr.bf16.mxu0 %v1008
    %1350 = vmatpush1.bf16.msra.mxu0 %v1007
    %1351 = vmatprep.subr.bf16.mxu0 %v1012
    %1352 = vmatpush1.bf16.msra.mxu0 %v1011
    %1353 = vmatprep.subr.bf16.mxu0 %v1016
    %1354 = vmatpush1.bf16.msra.mxu0 %v1015
    %1355 = vmatprep.subr.bf16.mxu0 %v1020
    %1356 = vmatpush1.bf16.msra.mxu0 %v1019
    %1357 = vmatprep.subr.bf16.mxu0 %v1024
    %1358 = vmatpush1.bf16.msra.mxu0 %v1023
    %1359 = vmatprep.subr.bf16.mxu0 %v1028
    %1360 = vmatpush1.bf16.msra.mxu0 %v1027
    %1361 = vmatprep.subr.bf16.mxu0 %v1032
    %1362 = vmatpush1.bf16.msra.mxu0 %v1031
    %1363 = vmatprep.subr.bf16.mxu0 %v1036
    %1364 = vmatpush1.bf16.msra.mxu0 %v1035
    %1365 = vmatprep.subr.bf16.mxu0 %v1040
    %1366 = vmatpush1.bf16.msra.mxu0 %v1039
    %1367 = vmatprep.subr.bf16.mxu0 %v1044
    %1368 = vmatpush1.bf16.msra.mxu0 %v1043
    %1369 = vmatprep.subr.bf16.mxu0 %v1048
    %1370 = vmatpush1.bf16.msra.mxu0 %v1047
    %1371 = vmatprep.subr.bf16.mxu0 %v1052
    %1372 = vmatpush1.bf16.msra.mxu0 %v1051
    %1373 = vmatprep.mubr.bf16.mxu0 %v55
    %1374 = vmatmul.mubr.bf16.gmra.mrb[0].mxu0 %v54
    %v1375 = vpop.f32.mrb[0].mxu0
    %v1376 = vadd.f32 %v1335, %v1375
    %v1377 = vpop.f32.mrb[0].mxu0
    %v1378 = vadd.f32 %v1337, %v1377
    %v1379 = vpop.f32.mrb[0].mxu0
    %v1380 = vpop.f32.mrb[0].mxu0
    %1381 = vdwg.mxu0
    %1382 = vmatprep.subr.bf16.mxu0 %v1056
    %1383 = vmatpush1.bf16.msra.mxu0 %v1055
    %1384 = vmatprep.subr.bf16.mxu0 0
    %1385 = vmatpush1.bf16.msra.mxu0 0
    %1386 = vmatprep.subr.bf16.mxu0 0
    %1387 = vmatpush1.bf16.msra.mxu0 0
    %1388 = vmatprep.subr.bf16.mxu0 0
    %1389 = vmatpush1.bf16.msra.mxu0 0
    %1390 = vmatprep.subr.bf16.mxu0 0
    %1391 = vmatpush1.bf16.msra.mxu0 0
    %1392 = vmatprep.subr.bf16.mxu0 0
    %1393 = vmatpush1.bf16.msra.mxu0 0
    %1394 = vmatprep.subr.bf16.mxu0 0
    %1395 = vmatpush1.bf16.msra.mxu0 0
    %1396 = vmatprep.subr.bf16.mxu0 0
    %1397 = vmatpush1.bf16.msra.mxu0 0
    %1398 = vmatprep.subr.bf16.mxu0 0
    %1399 = vmatpush1.bf16.msra.mxu0 0
    %1400 = vmatprep.subr.bf16.mxu0 0
    %1401 = vmatpush1.bf16.msra.mxu0 0
    %1402 = vmatprep.subr.bf16.mxu0 0
    %1403 = vmatpush1.bf16.msra.mxu0 0
    %1404 = vmatprep.subr.bf16.mxu0 0
    %1405 = vmatpush1.bf16.msra.mxu0 0
    %1406 = vmatprep.subr.bf16.mxu0 0
    %1407 = vmatpush1.bf16.msra.mxu0 0
    %1408 = vmatprep.subr.bf16.mxu0 0
    %1409 = vmatpush1.bf16.msra.mxu0 0
    %1410 = vmatprep.subr.bf16.mxu0 0
    %1411 = vmatpush1.bf16.msra.mxu0 0
    %1412 = vmatprep.subr.bf16.mxu0 0
    %1413 = vmatpush1.bf16.msra.mxu0 0
    %1414 = vmatprep.mubr.bf16.mxu0 0
    %1415 = vmatmul.mubr.bf16.gmra.mrb[0].mxu0 %v1257
    %v1416 = vpop.f32.mrb[0].mxu0
    %v1417 = vadd.f32 %v1376, %v1416
    %v1418 = vpop.f32.mrb[0].mxu0
    %v1419 = vadd.f32 %v1378, %v1418
    %v1420 = vpop.f32.mrb[0].mxu0
    %v1421 = vpop.f32.mrb[0].mxu0
    %1422 = vdwg.mxu0
    %1423 = vmatprep.subr.bf16.mxu0 %v866
    %1424 = vmatpush1.bf16.msra.mxu0 %v865
    %1425 = vmatprep.subr.bf16.mxu0 %v870
    %1426 = vmatpush1.bf16.msra.mxu0 %v869
    %1427 = vmatprep.subr.bf16.mxu0 %v874
    %1428 = vmatpush1.bf16.msra.mxu0 %v873
    %1429 = vmatprep.subr.bf16.mxu0 %v878
    %1430 = vmatpush1.bf16.msra.mxu0 %v877
    %1431 = vmatprep.subr.bf16.mxu0 %v882
    %1432 = vmatpush1.bf16.msra.mxu0 %v881
    %1433 = vmatprep.subr.bf16.mxu0 %v886
    %1434 = vmatpush1.bf16.msra.mxu0 %v885
    %1435 = vmatprep.subr.bf16.mxu0 %v890
    %1436 = vmatpush1.bf16.msra.mxu0 %v889
    %1437 = vmatprep.subr.bf16.mxu0 %v894
    %1438 = vmatpush1.bf16.msra.mxu0 %v893
    %1439 = vmatprep.subr.bf16.mxu0 %v898
    %1440 = vmatpush1.bf16.msra.mxu0 %v897
    %1441 = vmatprep.subr.bf16.mxu0 %v902
    %1442 = vmatpush1.bf16.msra.mxu0 %v901
    %1443 = vmatprep.subr.bf16.mxu0 %v906
    %1444 = vmatpush1.bf16.msra.mxu0 %v905
    %1445 = vmatprep.subr.bf16.mxu0 %v910
    %1446 = vmatpush1.bf16.msra.mxu0 %v909
    %1447 = vmatprep.subr.bf16.mxu0 %v914
    %1448 = vmatpush1.bf16.msra.mxu0 %v913
    %1449 = vmatprep.subr.bf16.mxu0 %v918
    %1450 = vmatpush1.bf16.msra.mxu0 %v917
    %1451 = vmatprep.subr.bf16.mxu0 %v922
    %1452 = vmatpush1.bf16.msra.mxu0 %v921
    %1453 = vmatprep.subr.bf16.mxu0 %v926
    %1454 = vmatpush1.bf16.msra.mxu0 %v925
    %1455 = vmatprep.mubr.bf16.mxu0 %v51
    %1456 = vmatmul.mubr.bf16.gmra.mrb[0].mxu0 %v50
    %v1457 = vpop.f32.mrb[0].mxu0
    %v1458 = vadd.f32 %v266, %v1457
    %v1459 = vpop.f32.mrb[0].mxu0
    %v1460 = vadd.f32 %v270, %v1459
    %v1461 = vpop.f32.mrb[0].mxu0
    %v1462 = vpop.f32.mrb[0].mxu0
    %1463 = vdwg.mxu0
    %1464 = vmatprep.subr.bf16.mxu0 %v930
    %1465 = vmatpush1.bf16.msra.mxu0 %v929
    %1466 = vmatprep.subr.bf16.mxu0 %v934
    %1467 = vmatpush1.bf16.msra.mxu0 %v933
    %1468 = vmatprep.subr.bf16.mxu0 %v938
    %1469 = vmatpush1.bf16.msra.mxu0 %v937
    %1470 = vmatprep.subr.bf16.mxu0 %v942
    %1471 = vmatpush1.bf16.msra.mxu0 %v941
    %1472 = vmatprep.subr.bf16.mxu0 %v946
    %1473 = vmatpush1.bf16.msra.mxu0 %v945
    %1474 = vmatprep.subr.bf16.mxu0 %v950
    %1475 = vmatpush1.bf16.msra.mxu0 %v949
    %1476 = vmatprep.subr.bf16.mxu0 %v954
    %1477 = vmatpush1.bf16.msra.mxu0 %v953
    %1478 = vmatprep.subr.bf16.mxu0 %v958
    %1479 = vmatpush1.bf16.msra.mxu0 %v957
    %1480 = vmatprep.subr.bf16.mxu0 %v962
    %1481 = vmatpush1.bf16.msra.mxu0 %v961
    %1482 = vmatprep.subr.bf16.mxu0 %v966
    %1483 = vmatpush1.bf16.msra.mxu0 %v965
    %1484 = vmatprep.subr.bf16.mxu0 %v970
    %1485 = vmatpush1.bf16.msra.mxu0 %v969
    %1486 = vmatprep.subr.bf16.mxu0 %v974
    %1487 = vmatpush1.bf16.msra.mxu0 %v973
    %1488 = vmatprep.subr.bf16.mxu0 %v978
    %1489 = vmatpush1.bf16.msra.mxu0 %v977
    %1490 = vmatprep.subr.bf16.mxu0 %v982
    %1491 = vmatpush1.bf16.msra.mxu0 %v981
    %1492 = vmatprep.subr.bf16.mxu0 %v986
    %1493 = vmatpush1.bf16.msra.mxu0 %v985
    %1494 = vmatprep.subr.bf16.mxu0 %v990
    %1495 = vmatpush1.bf16.msra.mxu0 %v989
    %1496 = vmatprep.mubr.bf16.mxu0 %v53
    %1497 = vmatmul.mubr.bf16.gmra.mrb[0].mxu0 %v52
    %v1498 = vpop.f32.mrb[0].mxu0
    %v1499 = vadd.f32 %v1458, %v1498
    %v1500 = vpop.f32.mrb[0].mxu0
    %v1501 = vadd.f32 %v1460, %v1500
    %v1502 = vpop.f32.mrb[0].mxu0
    %v1503 = vpop.f32.mrb[0].mxu0
    %1504 = vdwg.mxu0
    %1505 = vmatprep.subr.bf16.mxu0 %v994
    %1506 = vmatpush1.bf16.msra.mxu0 %v993
    %1507 = vmatprep.subr.bf16.mxu0 %v998
    %1508 = vmatpush1.bf16.msra.mxu0 %v997
    %1509 = vmatprep.subr.bf16.mxu0 %v1002
    %1510 = vmatpush1.bf16.msra.mxu0 %v1001
    %1511 = vmatprep.subr.bf16.mxu0 %v1006
    %1512 = vmatpush1.bf16.msra.mxu0 %v1005
    %1513 = vmatprep.subr.bf16.mxu0 %v1010
    %1514 = vmatpush1.bf16.msra.mxu0 %v1009
    %1515 = vmatprep.subr.bf16.mxu0 %v1014
    %1516 = vmatpush1.bf16.msra.mxu0 %v1013
    %1517 = vmatprep.subr.bf16.mxu0 %v1018
    %1518 = vmatpush1.bf16.msra.mxu0 %v1017
    %1519 = vmatprep.subr.bf16.mxu0 %v1022
    %1520 = vmatpush1.bf16.msra.mxu0 %v1021
    %1521 = vmatprep.subr.bf16.mxu0 %v1026
    %1522 = vmatpush1.bf16.msra.mxu0 %v1025
    %1523 = vmatprep.subr.bf16.mxu0 %v1030
    %1524 = vmatpush1.bf16.msra.mxu0 %v1029
    %1525 = vmatprep.subr.bf16.mxu0 %v1034
    %1526 = vmatpush1.bf16.msra.mxu0 %v1033
    %1527 = vmatprep.subr.bf16.mxu0 %v1038
    %1528 = vmatpush1.bf16.msra.mxu0 %v1037
    %1529 = vmatprep.subr.bf16.mxu0 %v1042
    %1530 = vmatpush1.bf16.msra.mxu0 %v1041
    %1531 = vmatprep.subr.bf16.mxu0 %v1046
    %1532 = vmatpush1.bf16.msra.mxu0 %v1045
    %1533 = vmatprep.subr.bf16.mxu0 %v1050
    %1534 = vmatpush1.bf16.msra.mxu0 %v1049
    %1535 = vmatprep.subr.bf16.mxu0 %v1054
    %1536 = vmatpush1.bf16.msra.mxu0 %v1053
    %1537 = vmatprep.mubr.bf16.mxu0 %v55
    %1538 = vmatmul.mubr.bf16.gmra.mrb[0].mxu0 %v54
    %v1539 = vpop.f32.mrb[0].mxu0
    %v1540 = vadd.f32 %v1499, %v1539
    %v1541 = vpop.f32.mrb[0].mxu0
    %v1542 = vadd.f32 %v1501, %v1541
    %v1543 = vpop.f32.mrb[0].mxu0
    %v1544 = vpop.f32.mrb[0].mxu0
    %1545 = vdwg.mxu0
    %1546 = vmatprep.subr.bf16.mxu0 %v1058
    %1547 = vmatpush1.bf16.msra.mxu0 %v1057
    %1548 = vmatprep.subr.bf16.mxu0 0
    %1549 = vmatpush1.bf16.msra.mxu0 0
    %1550 = vmatprep.subr.bf16.mxu0 0
    %1551 = vmatpush1.bf16.msra.mxu0 0
    %1552 = vmatprep.subr.bf16.mxu0 0
    %1553 = vmatpush1.bf16.msra.mxu0 0
    %1554 = vmatprep.subr.bf16.mxu0 0
    %1555 = vmatpush1.bf16.msra.mxu0 0
    %1556 = vmatprep.subr.bf16.mxu0 0
    %1557 = vmatpush1.bf16.msra.mxu0 0
    %1558 = vmatprep.subr.bf16.mxu0 0
    %1559 = vmatpush1.bf16.msra.mxu0 0
    %1560 = vmatprep.subr.bf16.mxu0 0
    %1561 = vmatpush1.bf16.msra.mxu0 0
    %1562 = vmatprep.subr.bf16.mxu0 0
    %1563 = vmatpush1.bf16.msra.mxu0 0
    %1564 = vmatprep.subr.bf16.mxu0 0
    %1565 = vmatpush1.bf16.msra.mxu0 0
    %1566 = vmatprep.subr.bf16.mxu0 0
    %1567 = vmatpush1.bf16.msra.mxu0 0
    %1568 = vmatprep.subr.bf16.mxu0 0
    %1569 = vmatpush1.bf16.msra.mxu0 0
    %1570 = vmatprep.subr.bf16.mxu0 0
    %1571 = vmatpush1.bf16.msra.mxu0 0
    %1572 = vmatprep.subr.bf16.mxu0 0
    %1573 = vmatpush1.bf16.msra.mxu0 0
    %1574 = vmatprep.subr.bf16.mxu0 0
    %1575 = vmatpush1.bf16.msra.mxu0 0
    %1576 = vmatprep.subr.bf16.mxu0 0
    %1577 = vmatpush1.bf16.msra.mxu0 0
    %1578 = vmatprep.mubr.bf16.mxu0 0
    %1579 = vmatmul.mubr.bf16.gmra.mrb[0].mxu0 %v1257
    %v1580 = vpop.f32.mrb[0].mxu0
    %v1581 = vadd.f32 %v1540, %v1580
    %v1582 = vpop.f32.mrb[0].mxu0
    %v1583 = vadd.f32 %v1542, %v1582
    %v1584 = vpop.f32.mrb[0].mxu0
    %v1585 = vpop.f32.mrb[0].mxu0
    %1586 = vdwg.mxu0
    %vm1587 = vcmp.gt.f32.partialorder %v1417, 0.0
    %vm1588 = vcmp.gt.f32.partialorder %v1419, 0.0
    %vm1589 = vcmp.gt.f32.partialorder %v1581, 0.0
    %vm1590 = vcmp.gt.f32.partialorder %v1583, 0.0
    %v1591 = vmul.f32 %v1417, 0.2
    %v1592 = vmul.f32 %v1419, 0.2
    %v1593 = vmul.f32 %v1581, 0.2
    %v1594 = vmul.f32 %v1583, 0.2
    %v1595 = vsel %vm1587, %v1417, %v1591
    %v1596 = vsel %vm1588, %v1419, %v1592
    %v1597 = vsel %vm1589, %v1581, %v1593
    %v1598 = vsel %vm1590, %v1583, %v1594
    %v1599 = vpack.c.bf16 %v1595, %v1595
    %v1600 = vpack.c.bf16 %v1596, %v1596
    %v1601 = vpack.c.bf16 %v1597, %v1597
    %v1602 = vpack.c.bf16 %v1598, %v1598
    %v1603 = vld [vmem:[%s3] sm:$0xff]
    %v1604 = vld [vmem:[%s3 + $0x8] sm:$0xff]
    %v1605 = vld [vmem:[%s3 + $0x10] sm:$0xff]
    %v1606 = vld [vmem:[%s3 + $0x18] sm:$0xff]
    %v1607 = vld [vmem:[%s3 + $0x20] sm:$0xff]
    %v1608 = vld [vmem:[%s3 + $0x28] sm:$0xff]
    %v1609 = vld [vmem:[%s3 + $0x30] sm:$0xff]
    %v1610 = vld [vmem:[%s3 + $0x38] sm:$0xff]
    %v1611 = vld [vmem:[%s3 + $0x40] sm:$0xff]
    %v1612 = vld [vmem:[%s3 + $0x48] sm:$0xff]
    %v1613 = vld [vmem:[%s3 + $0x50] sm:$0xff]
    %v1614 = vld [vmem:[%s3 + $0x58] sm:$0xff]
    %v1615 = vld [vmem:[%s3 + $0x60] sm:$0xff]
    %v1616 = vld [vmem:[%s3 + $0x68] sm:$0xff]
    %v1617 = vld [vmem:[%s3 + $0x70] sm:$0xff]
    %v1618 = vld [vmem:[%s3 + $0x78] sm:$0xff]
    %v1619 = vld [vmem:[%s3 + $0x80] sm:$0xff]
    %v1620 = vld [vmem:[%s3 + $0x88] sm:$0xff]
    %v1621 = vld [vmem:[%s3 + $0x90] sm:$0xff]
    %v1622 = vld [vmem:[%s3 + $0x98] sm:$0xff]
    %v1623 = vld [vmem:[%s3 + $0xa0] sm:$0xff]
    %v1624 = vld [vmem:[%s3 + $0xa8] sm:$0xff]
    %v1625 = vld [vmem:[%s3 + $0xb0] sm:$0xff]
    %v1626 = vld [vmem:[%s3 + $0xb8] sm:$0xff]
    %v1627 = vld [vmem:[%s3 + $0xc0] sm:$0xff]
    %v1628 = vld [vmem:[%s3 + $0xc8] sm:$0xff]
    %v1629 = vld [vmem:[%s3 + $0xd0] sm:$0xff]
    %v1630 = vld [vmem:[%s3 + $0xd8] sm:$0xff]
    %v1631 = vld [vmem:[%s3 + $0xe0] sm:$0xff]
    %v1632 = vld [vmem:[%s3 + $0xe8] sm:$0xff]
    %v1633 = vld [vmem:[%s3 + $0xf0] sm:$0xff]
    %v1634 = vld [vmem:[%s3 + $0xf8] sm:$0xff]
    %v1635 = vld [vmem:[%s3 + $0x100] sm:$0xff]
    %v1636 = vld [vmem:[%s3 + $0x108] sm:$0xff]
    %v1637 = vld [vmem:[%s3 + $0x110] sm:$0xff]
    %v1638 = vld [vmem:[%s3 + $0x118] sm:$0xff]
    %v1639 = vld [vmem:[%s3 + $0x120] sm:$0xff]
    %v1640 = vld [vmem:[%s3 + $0x128] sm:$0xff]
    %v1641 = vld [vmem:[%s3 + $0x130] sm:$0xff]
    %v1642 = vld [vmem:[%s3 + $0x138] sm:$0xff]
    %v1643 = vld [vmem:[%s3 + $0x140] sm:$0xff]
    %v1644 = vld [vmem:[%s3 + $0x148] sm:$0xff]
    %v1645 = vld [vmem:[%s3 + $0x150] sm:$0xff]
    %v1646 = vld [vmem:[%s3 + $0x158] sm:$0xff]
    %v1647 = vld [vmem:[%s3 + $0x160] sm:$0xff]
    %v1648 = vld [vmem:[%s3 + $0x168] sm:$0xff]
    %v1649 = vld [vmem:[%s3 + $0x170] sm:$0xff]
    %v1650 = vld [vmem:[%s3 + $0x178] sm:$0xff]
    %v1651 = vld [vmem:[%s3 + $0x180] sm:$0xff]
    %v1652 = vld [vmem:[%s3 + $0x188] sm:$0xff]
    %v1653 = vld [vmem:[%s3 + $0x190] sm:$0xff]
    %v1654 = vld [vmem:[%s3 + $0x198] sm:$0xff]
    %v1655 = vld [vmem:[%s3 + $0x1a0] sm:$0xff]
    %v1656 = vld [vmem:[%s3 + $0x1a8] sm:$0xff]
    %v1657 = vld [vmem:[%s3 + $0x1b0] sm:$0xff]
    %v1658 = vld [vmem:[%s3 + $0x1b8] sm:$0xff]
    %v1659 = vld [vmem:[%s3 + $0x1c0] sm:$0xff]
    %v1660 = vld [vmem:[%s3 + $0x1c8] sm:$0xff]
    %v1661 = vld [vmem:[%s3 + $0x1d0] sm:$0xff]
    %v1662 = vld [vmem:[%s3 + $0x1d8] sm:$0xff]
    %v1663 = vld [vmem:[%s3 + $0x1e0] sm:$0xff]
    %v1664 = vld [vmem:[%s3 + $0x1e8] sm:$0xff]
    %v1665 = vld [vmem:[%s3 + $0x1f0] sm:$0xff]
    %v1666 = vld [vmem:[%s3 + $0x1f8] sm:$0xff]
    %v1667 = vld [vmem:[%s4] sm:$0x3]
    %v1669 = vlaneseq
    %v1670 = vshrl.u32 %v1669, 7
    %v1671 = vsub.s32 0, %v1670
    %v1672 = vrot.slane %v1667, %v1671
    %v1673 = vlaneseq
    %v1674 = vshrl.u32 %v1673, 7
    %v1675 = vsub.s32 1, %v1674
    %v1676 = vrot.slane %v1667, %v1675
    %v1743 = vunpack.c.l.b16 %v1603
    %v1744 = vunpack.c.h.b16 %v1603
    %v1745 = vunpack.c.l.b16 %v1604
    %v1746 = vunpack.c.h.b16 %v1604
    %v1747 = vunpack.c.l.b16 %v1605
    %v1748 = vunpack.c.h.b16 %v1605
    %v1749 = vunpack.c.l.b16 %v1606
    %v1750 = vunpack.c.h.b16 %v1606
    %v1751 = vunpack.c.l.b16 %v1607
    %v1752 = vunpack.c.h.b16 %v1607
    %v1753 = vunpack.c.l.b16 %v1608
    %v1754 = vunpack.c.h.b16 %v1608
    %v1755 = vunpack.c.l.b16 %v1609
    %v1756 = vunpack.c.h.b16 %v1609
    %v1757 = vunpack.c.l.b16 %v1610
    %v1758 = vunpack.c.h.b16 %v1610
    %v1759 = vunpack.c.l.b16 %v1611
    %v1760 = vunpack.c.h.b16 %v1611
    %v1761 = vunpack.c.l.b16 %v1612
    %v1762 = vunpack.c.h.b16 %v1612
    %v1763 = vunpack.c.l.b16 %v1613
    %v1764 = vunpack.c.h.b16 %v1613
    %v1765 = vunpack.c.l.b16 %v1614
    %v1766 = vunpack.c.h.b16 %v1614
    %v1767 = vunpack.c.l.b16 %v1615
    %v1768 = vunpack.c.h.b16 %v1615
    %v1769 = vunpack.c.l.b16 %v1616
    %v1770 = vunpack.c.h.b16 %v1616
    %v1771 = vunpack.c.l.b16 %v1617
    %v1772 = vunpack.c.h.b16 %v1617
    %v1773 = vunpack.c.l.b16 %v1618
    %v1774 = vunpack.c.h.b16 %v1618
    %v1775 = vunpack.c.l.b16 %v1619
    %v1776 = vunpack.c.h.b16 %v1619
    %v1777 = vunpack.c.l.b16 %v1620
    %v1778 = vunpack.c.h.b16 %v1620
    %v1779 = vunpack.c.l.b16 %v1621
    %v1780 = vunpack.c.h.b16 %v1621
    %v1781 = vunpack.c.l.b16 %v1622
    %v1782 = vunpack.c.h.b16 %v1622
    %v1783 = vunpack.c.l.b16 %v1623
    %v1784 = vunpack.c.h.b16 %v1623
    %v1785 = vunpack.c.l.b16 %v1624
    %v1786 = vunpack.c.h.b16 %v1624
    %v1787 = vunpack.c.l.b16 %v1625
    %v1788 = vunpack.c.h.b16 %v1625
    %v1789 = vunpack.c.l.b16 %v1626
    %v1790 = vunpack.c.h.b16 %v1626
    %v1791 = vunpack.c.l.b16 %v1627
    %v1792 = vunpack.c.h.b16 %v1627
    %v1793 = vunpack.c.l.b16 %v1628
    %v1794 = vunpack.c.h.b16 %v1628
    %v1795 = vunpack.c.l.b16 %v1629
    %v1796 = vunpack.c.h.b16 %v1629
    %v1797 = vunpack.c.l.b16 %v1630
    %v1798 = vunpack.c.h.b16 %v1630
    %v1799 = vunpack.c.l.b16 %v1631
    %v1800 = vunpack.c.h.b16 %v1631
    %v1801 = vunpack.c.l.b16 %v1632
    %v1802 = vunpack.c.h.b16 %v1632
    %v1803 = vunpack.c.l.b16 %v1633
    %v1804 = vunpack.c.h.b16 %v1633
    %v1805 = vunpack.c.l.b16 %v1634
    %v1806 = vunpack.c.h.b16 %v1634
    %v1807 = vunpack.c.l.b16 %v1635
    %v1808 = vunpack.c.h.b16 %v1635
    %v1809 = vunpack.c.l.b16 %v1636
    %v1810 = vunpack.c.h.b16 %v1636
    %v1811 = vunpack.c.l.b16 %v1637
    %v1812 = vunpack.c.h.b16 %v1637
    %v1813 = vunpack.c.l.b16 %v1638
    %v1814 = vunpack.c.h.b16 %v1638
    %v1815 = vunpack.c.l.b16 %v1639
    %v1816 = vunpack.c.h.b16 %v1639
    %v1817 = vunpack.c.l.b16 %v1640
    %v1818 = vunpack.c.h.b16 %v1640
    %v1819 = vunpack.c.l.b16 %v1641
    %v1820 = vunpack.c.h.b16 %v1641
    %v1821 = vunpack.c.l.b16 %v1642
    %v1822 = vunpack.c.h.b16 %v1642
    %v1823 = vunpack.c.l.b16 %v1643
    %v1824 = vunpack.c.h.b16 %v1643
    %v1825 = vunpack.c.l.b16 %v1644
    %v1826 = vunpack.c.h.b16 %v1644
    %v1827 = vunpack.c.l.b16 %v1645
    %v1828 = vunpack.c.h.b16 %v1645
    %v1829 = vunpack.c.l.b16 %v1646
    %v1830 = vunpack.c.h.b16 %v1646
    %v1831 = vunpack.c.l.b16 %v1647
    %v1832 = vunpack.c.h.b16 %v1647
    %v1833 = vunpack.c.l.b16 %v1648
    %v1834 = vunpack.c.h.b16 %v1648
    %v1835 = vunpack.c.l.b16 %v1649
    %v1836 = vunpack.c.h.b16 %v1649
    %v1837 = vunpack.c.l.b16 %v1650
    %v1838 = vunpack.c.h.b16 %v1650
    %v1839 = vunpack.c.l.b16 %v1651
    %v1840 = vunpack.c.h.b16 %v1651
    %v1841 = vunpack.c.l.b16 %v1652
    %v1842 = vunpack.c.h.b16 %v1652
    %v1843 = vunpack.c.l.b16 %v1653
    %v1844 = vunpack.c.h.b16 %v1653
    %v1845 = vunpack.c.l.b16 %v1654
    %v1846 = vunpack.c.h.b16 %v1654
    %v1847 = vunpack.c.l.b16 %v1655
    %v1848 = vunpack.c.h.b16 %v1655
    %v1849 = vunpack.c.l.b16 %v1656
    %v1850 = vunpack.c.h.b16 %v1656
    %v1851 = vunpack.c.l.b16 %v1657
    %v1852 = vunpack.c.h.b16 %v1657
    %v1853 = vunpack.c.l.b16 %v1658
    %v1854 = vunpack.c.h.b16 %v1658
    %v1855 = vunpack.c.l.b16 %v1659
    %v1856 = vunpack.c.h.b16 %v1659
    %v1857 = vunpack.c.l.b16 %v1660
    %v1858 = vunpack.c.h.b16 %v1660
    %v1859 = vunpack.c.l.b16 %v1661
    %v1860 = vunpack.c.h.b16 %v1661
    %v1861 = vunpack.c.l.b16 %v1662
    %v1862 = vunpack.c.h.b16 %v1662
    %v1863 = vunpack.c.l.b16 %v1663
    %v1864 = vunpack.c.h.b16 %v1663
    %v1865 = vunpack.c.l.b16 %v1664
    %v1866 = vunpack.c.h.b16 %v1664
    %v1867 = vunpack.c.l.b16 %v1665
    %v1868 = vunpack.c.h.b16 %v1665
    %v1869 = vunpack.c.l.b16 %v1666
    %v1870 = vunpack.c.h.b16 %v1666
    %v1871 = vpack.c.b16 %v1745, %v1743
    %v1872 = vpack.c.b16 %v1746, %v1744
    %v1873 = vpack.c.b16 %v1749, %v1747
    %v1874 = vpack.c.b16 %v1750, %v1748
    %v1875 = vpack.c.b16 %v1753, %v1751
    %v1876 = vpack.c.b16 %v1754, %v1752
    %v1877 = vpack.c.b16 %v1757, %v1755
    %v1878 = vpack.c.b16 %v1758, %v1756
    %v1879 = vpack.c.b16 %v1761, %v1759
    %v1880 = vpack.c.b16 %v1762, %v1760
    %v1881 = vpack.c.b16 %v1765, %v1763
    %v1882 = vpack.c.b16 %v1766, %v1764
    %v1883 = vpack.c.b16 %v1769, %v1767
    %v1884 = vpack.c.b16 %v1770, %v1768
    %v1885 = vpack.c.b16 %v1773, %v1771
    %v1886 = vpack.c.b16 %v1774, %v1772
    %v1887 = vpack.c.b16 %v1777, %v1775
    %v1888 = vpack.c.b16 %v1778, %v1776
    %v1889 = vpack.c.b16 %v1781, %v1779
    %v1890 = vpack.c.b16 %v1782, %v1780
    %v1891 = vpack.c.b16 %v1785, %v1783
    %v1892 = vpack.c.b16 %v1786, %v1784
    %v1893 = vpack.c.b16 %v1789, %v1787
    %v1894 = vpack.c.b16 %v1790, %v1788
    %v1895 = vpack.c.b16 %v1793, %v1791
    %v1896 = vpack.c.b16 %v1794, %v1792
    %v1897 = vpack.c.b16 %v1797, %v1795
    %v1898 = vpack.c.b16 %v1798, %v1796
    %v1899 = vpack.c.b16 %v1801, %v1799
    %v1900 = vpack.c.b16 %v1802, %v1800
    %v1901 = vpack.c.b16 %v1805, %v1803
    %v1902 = vpack.c.b16 %v1806, %v1804
    %v1903 = vpack.c.b16 %v1809, %v1807
    %v1904 = vpack.c.b16 %v1810, %v1808
    %v1905 = vpack.c.b16 %v1813, %v1811
    %v1906 = vpack.c.b16 %v1814, %v1812
    %v1907 = vpack.c.b16 %v1817, %v1815
    %v1908 = vpack.c.b16 %v1818, %v1816
    %v1909 = vpack.c.b16 %v1821, %v1819
    %v1910 = vpack.c.b16 %v1822, %v1820
    %v1911 = vpack.c.b16 %v1825, %v1823
    %v1912 = vpack.c.b16 %v1826, %v1824
    %v1913 = vpack.c.b16 %v1829, %v1827
    %v1914 = vpack.c.b16 %v1830, %v1828
    %v1915 = vpack.c.b16 %v1833, %v1831
    %v1916 = vpack.c.b16 %v1834, %v1832
    %v1917 = vpack.c.b16 %v1837, %v1835
    %v1918 = vpack.c.b16 %v1838, %v1836
    %v1919 = vpack.c.b16 %v1841, %v1839
    %v1920 = vpack.c.b16 %v1842, %v1840
    %v1921 = vpack.c.b16 %v1845, %v1843
    %v1922 = vpack.c.b16 %v1846, %v1844
    %v1923 = vpack.c.b16 %v1849, %v1847
    %v1924 = vpack.c.b16 %v1850, %v1848
    %v1925 = vpack.c.b16 %v1853, %v1851
    %v1926 = vpack.c.b16 %v1854, %v1852
    %v1927 = vpack.c.b16 %v1857, %v1855
    %v1928 = vpack.c.b16 %v1858, %v1856
    %v1929 = vpack.c.b16 %v1861, %v1859
    %v1930 = vpack.c.b16 %v1862, %v1860
    %v1931 = vpack.c.b16 %v1865, %v1863
    %v1932 = vpack.c.b16 %v1866, %v1864
    %v1933 = vpack.c.b16 %v1869, %v1867
    %v1934 = vpack.c.b16 %v1870, %v1868
    %1999 = vmatprep.subr.bf16.mxu0 %v1872
    %2000 = vmatpush1.bf16.msra.mxu0 %v1871
    %2001 = vmatprep.subr.bf16.mxu0 %v1874
    %2002 = vmatpush1.bf16.msra.mxu0 %v1873
    %2003 = vmatprep.subr.bf16.mxu0 %v1876
    %2004 = vmatpush1.bf16.msra.mxu0 %v1875
    %2005 = vmatprep.subr.bf16.mxu0 %v1878
    %2006 = vmatpush1.bf16.msra.mxu0 %v1877
    %2007 = vmatprep.subr.bf16.mxu0 %v1880
    %2008 = vmatpush1.bf16.msra.mxu0 %v1879
    %2009 = vmatprep.subr.bf16.mxu0 %v1882
    %2010 = vmatpush1.bf16.msra.mxu0 %v1881
    %2011 = vmatprep.subr.bf16.mxu0 %v1884
    %2012 = vmatpush1.bf16.msra.mxu0 %v1883
    %2013 = vmatprep.subr.bf16.mxu0 %v1886
    %2014 = vmatpush1.bf16.msra.mxu0 %v1885
    %2015 = vmatprep.subr.bf16.mxu0 %v1888
    %2016 = vmatpush1.bf16.msra.mxu0 %v1887
    %2017 = vmatprep.subr.bf16.mxu0 %v1890
    %2018 = vmatpush1.bf16.msra.mxu0 %v1889
    %2019 = vmatprep.subr.bf16.mxu0 %v1892
    %2020 = vmatpush1.bf16.msra.mxu0 %v1891
    %2021 = vmatprep.subr.bf16.mxu0 %v1894
    %2022 = vmatpush1.bf16.msra.mxu0 %v1893
    %2023 = vmatprep.subr.bf16.mxu0 %v1896
    %2024 = vmatpush1.bf16.msra.mxu0 %v1895
    %2025 = vmatprep.subr.bf16.mxu0 %v1898
    %2026 = vmatpush1.bf16.msra.mxu0 %v1897
    %2027 = vmatprep.subr.bf16.mxu0 %v1900
    %2028 = vmatpush1.bf16.msra.mxu0 %v1899
    %2029 = vmatprep.subr.bf16.mxu0 %v1902
    %2030 = vmatpush1.bf16.msra.mxu0 %v1901
    %2031 = vmatprep.mubr.bf16.mxu0 %v1600
    %2032 = vmatmul.mubr.bf16.gmra.mrb[0].mxu0 %v1599
    %v2033 = vpop.f32.mrb[0].mxu0
    %v2034 = vadd.f32 %v1672, %v2033
    %v2035 = vpop.f32.mrb[0].mxu0
    %v2036 = vadd.f32 %v1676, %v2035
    %v2037 = vpop.f32.mrb[0].mxu0
    %v2038 = vpop.f32.mrb[0].mxu0
    %2039 = vdwg.mxu0
    %2040 = vmatprep.subr.bf16.mxu0 %v1904
    %2041 = vmatpush1.bf16.msra.mxu0 %v1903
    %2042 = vmatprep.subr.bf16.mxu0 %v1906
    %2043 = vmatpush1.bf16.msra.mxu0 %v1905
    %2044 = vmatprep.subr.bf16.mxu0 %v1908
    %2045 = vmatpush1.bf16.msra.mxu0 %v1907
    %2046 = vmatprep.subr.bf16.mxu0 %v1910
    %2047 = vmatpush1.bf16.msra.mxu0 %v1909
    %2048 = vmatprep.subr.bf16.mxu0 %v1912
    %2049 = vmatpush1.bf16.msra.mxu0 %v1911
    %2050 = vmatprep.subr.bf16.mxu0 %v1914
    %2051 = vmatpush1.bf16.msra.mxu0 %v1913
    %2052 = vmatprep.subr.bf16.mxu0 %v1916
    %2053 = vmatpush1.bf16.msra.mxu0 %v1915
    %2054 = vmatprep.subr.bf16.mxu0 %v1918
    %2055 = vmatpush1.bf16.msra.mxu0 %v1917
    %2056 = vmatprep.subr.bf16.mxu0 %v1920
    %2057 = vmatpush1.bf16.msra.mxu0 %v1919
    %2058 = vmatprep.subr.bf16.mxu0 %v1922
    %2059 = vmatpush1.bf16.msra.mxu0 %v1921
    %2060 = vmatprep.subr.bf16.mxu0 %v1924
    %2061 = vmatpush1.bf16.msra.mxu0 %v1923
    %2062 = vmatprep.subr.bf16.mxu0 %v1926
    %2063 = vmatpush1.bf16.msra.mxu0 %v1925
    %2064 = vmatprep.subr.bf16.mxu0 %v1928
    %2065 = vmatpush1.bf16.msra.mxu0 %v1927
    %2066 = vmatprep.subr.bf16.mxu0 %v1930
    %2067 = vmatpush1.bf16.msra.mxu0 %v1929
    %2068 = vmatprep.subr.bf16.mxu0 %v1932
    %2069 = vmatpush1.bf16.msra.mxu0 %v1931
    %2070 = vmatprep.subr.bf16.mxu0 %v1934
    %2071 = vmatpush1.bf16.msra.mxu0 %v1933
    %2072 = vmatprep.mubr.bf16.mxu0 %v1602
    %2073 = vmatmul.mubr.bf16.gmra.mrb[0].mxu0 %v1601
    %v2074 = vpop.f32.mrb[0].mxu0
    %v2075 = vadd.f32 %v2034, %v2074
    %v2076 = vpop.f32.mrb[0].mxu0
    %v2077 = vadd.f32 %v2036, %v2076
    %v2078 = vpop.f32.mrb[0].mxu0
    %v2079 = vpop.f32.mrb[0].mxu0
    %2080 = vdwg.mxu0
    %vm2081 = vcmp.gt.f32.partialorder %v2075, 0.0
    %vm2082 = vcmp.gt.f32.partialorder %v2077, 0.0
    %v2083 = vmul.f32 %v2075, 0.2
    %v2084 = vmul.f32 %v2077, 0.2
    %v2085 = vsel %vm2081, %v2075, %v2083
    %v2086 = vsel %vm2082, %v2077, %v2084
    %v2087 = vpack.c.bf16 %v2085, %v2085
    %v2088 = vpack.c.bf16 %v2086, %v2086
    %v2089 = vld [vmem:[%s5] sm:$0xf]
    %v2090 = vld [vmem:[%s5 + $0x4] sm:$0xf]
    %v2091 = vld [vmem:[%s5 + $0x8] sm:$0xf]
    %v2092 = vld [vmem:[%s5 + $0xc] sm:$0xf]
    %v2093 = vld [vmem:[%s5 + $0x10] sm:$0xf]
    %v2094 = vld [vmem:[%s5 + $0x14] sm:$0xf]
    %v2095 = vld [vmem:[%s5 + $0x18] sm:$0xf]
    %v2096 = vld [vmem:[%s5 + $0x1c] sm:$0xf]
    %v2097 = vld [vmem:[%s5 + $0x20] sm:$0xf]
    %v2098 = vld [vmem:[%s5 + $0x24] sm:$0xf]
    %v2099 = vld [vmem:[%s5 + $0x28] sm:$0xf]
    %v2100 = vld [vmem:[%s5 + $0x2c] sm:$0xf]
    %v2101 = vld [vmem:[%s5 + $0x30] sm:$0xf]
    %v2102 = vld [vmem:[%s5 + $0x34] sm:$0xf]
    %v2103 = vld [vmem:[%s5 + $0x38] sm:$0xf]
    %v2104 = vld [vmem:[%s5 + $0x3c] sm:$0xf]
    %v2105 = vld [vmem:[%s5 + $0x40] sm:$0xf]
    %v2106 = vld [vmem:[%s5 + $0x44] sm:$0xf]
    %v2107 = vld [vmem:[%s5 + $0x48] sm:$0xf]
    %v2108 = vld [vmem:[%s5 + $0x4c] sm:$0xf]
    %v2109 = vld [vmem:[%s5 + $0x50] sm:$0xf]
    %v2110 = vld [vmem:[%s5 + $0x54] sm:$0xf]
    %v2111 = vld [vmem:[%s5 + $0x58] sm:$0xf]
    %v2112 = vld [vmem:[%s5 + $0x5c] sm:$0xf]
    %v2113 = vld [vmem:[%s5 + $0x60] sm:$0xf]
    %v2114 = vld [vmem:[%s5 + $0x64] sm:$0xf]
    %v2115 = vld [vmem:[%s5 + $0x68] sm:$0xf]
    %v2116 = vld [vmem:[%s5 + $0x6c] sm:$0xf]
    %v2117 = vld [vmem:[%s5 + $0x70] sm:$0xf]
    %v2118 = vld [vmem:[%s5 + $0x74] sm:$0xf]
    %v2119 = vld [vmem:[%s5 + $0x78] sm:$0xf]
    %v2120 = vld [vmem:[%s5 + $0x7c] sm:$0xf]
    %v2153 = vunpack.c.l.b16 %v2089
    %v2154 = vunpack.c.l.b16 %v2090
    %v2155 = vunpack.c.l.b16 %v2091
    %v2156 = vunpack.c.l.b16 %v2092
    %v2157 = vunpack.c.l.b16 %v2093
    %v2158 = vunpack.c.l.b16 %v2094
    %v2159 = vunpack.c.l.b16 %v2095
    %v2160 = vunpack.c.l.b16 %v2096
    %v2161 = vunpack.c.l.b16 %v2097
    %v2162 = vunpack.c.l.b16 %v2098
    %v2163 = vunpack.c.l.b16 %v2099
    %v2164 = vunpack.c.l.b16 %v2100
    %v2165 = vunpack.c.l.b16 %v2101
    %v2166 = vunpack.c.l.b16 %v2102
    %v2167 = vunpack.c.l.b16 %v2103
    %v2168 = vunpack.c.l.b16 %v2104
    %v2169 = vunpack.c.l.b16 %v2105
    %v2170 = vunpack.c.l.b16 %v2106
    %v2171 = vunpack.c.l.b16 %v2107
    %v2172 = vunpack.c.l.b16 %v2108
    %v2173 = vunpack.c.l.b16 %v2109
    %v2174 = vunpack.c.l.b16 %v2110
    %v2175 = vunpack.c.l.b16 %v2111
    %v2176 = vunpack.c.l.b16 %v2112
    %v2177 = vunpack.c.l.b16 %v2113
    %v2178 = vunpack.c.l.b16 %v2114
    %v2179 = vunpack.c.l.b16 %v2115
    %v2180 = vunpack.c.l.b16 %v2116
    %v2181 = vunpack.c.l.b16 %v2117
    %v2182 = vunpack.c.l.b16 %v2118
    %v2183 = vunpack.c.l.b16 %v2119
    %v2184 = vunpack.c.l.b16 %v2120
    %v2185 = vpack.c.b16 %v2154, %v2153
    %v2186 = vpack.c.b16 %v2156, %v2155
    %v2187 = vpack.c.b16 %v2158, %v2157
    %v2188 = vpack.c.b16 %v2160, %v2159
    %v2189 = vpack.c.b16 %v2162, %v2161
    %v2190 = vpack.c.b16 %v2164, %v2163
    %v2191 = vpack.c.b16 %v2166, %v2165
    %v2192 = vpack.c.b16 %v2168, %v2167
    %v2193 = vpack.c.b16 %v2170, %v2169
    %v2194 = vpack.c.b16 %v2172, %v2171
    %v2195 = vpack.c.b16 %v2174, %v2173
    %v2196 = vpack.c.b16 %v2176, %v2175
    %v2197 = vpack.c.b16 %v2178, %v2177
    %v2198 = vpack.c.b16 %v2180, %v2179
    %v2199 = vpack.c.b16 %v2182, %v2181
    %v2200 = vpack.c.b16 %v2184, %v2183
    %2217 = vmatprep.subr.bf16.mxu0 0
    %2218 = vmatpush1.bf16.msra.mxu0 %v2185
    %2219 = vmatprep.subr.bf16.mxu0 0
    %2220 = vmatpush1.bf16.msra.mxu0 %v2186
    %2221 = vmatprep.subr.bf16.mxu0 0
    %2222 = vmatpush1.bf16.msra.mxu0 %v2187
    %2223 = vmatprep.subr.bf16.mxu0 0
    %2224 = vmatpush1.bf16.msra.mxu0 %v2188
    %2225 = vmatprep.subr.bf16.mxu0 0
    %2226 = vmatpush1.bf16.msra.mxu0 %v2189
    %2227 = vmatprep.subr.bf16.mxu0 0
    %2228 = vmatpush1.bf16.msra.mxu0 %v2190
    %2229 = vmatprep.subr.bf16.mxu0 0
    %2230 = vmatpush1.bf16.msra.mxu0 %v2191
    %2231 = vmatprep.subr.bf16.mxu0 0
    %2232 = vmatpush1.bf16.msra.mxu0 %v2192
    %2233 = vmatprep.subr.bf16.mxu0 0
    %2234 = vmatpush1.bf16.msra.mxu0 %v2193
    %2235 = vmatprep.subr.bf16.mxu0 0
    %2236 = vmatpush1.bf16.msra.mxu0 %v2194
    %2237 = vmatprep.subr.bf16.mxu0 0
    %2238 = vmatpush1.bf16.msra.mxu0 %v2195
    %2239 = vmatprep.subr.bf16.mxu0 0
    %2240 = vmatpush1.bf16.msra.mxu0 %v2196
    %2241 = vmatprep.subr.bf16.mxu0 0
    %2242 = vmatpush1.bf16.msra.mxu0 %v2197
    %2243 = vmatprep.subr.bf16.mxu0 0
    %2244 = vmatpush1.bf16.msra.mxu0 %v2198
    %2245 = vmatprep.subr.bf16.mxu0 0
    %2246 = vmatpush1.bf16.msra.mxu0 %v2199
    %2247 = vmatprep.subr.bf16.mxu0 0
    %2248 = vmatpush1.bf16.msra.mxu0 %v2200
    %2249 = vmatprep.mubr.bf16.mxu0 %v2088
    %2250 = vmatmul.mubr.bf16.gmra.mrb[0].mxu0 %v2087
    %v2251 = vpop.f32.mrb[0].mxu0
    %v2252 = vadd.f32 0.0, %v2251
    %v2253 = vpop.f32.mrb[0].mxu0
    %v2254 = vpop.f32.mrb[0].mxu0
    %v2255 = vpop.f32.mrb[0].mxu0
    %2256 = vdwg.mxu0
    %v2257 = vld [vmem:[#allocation2] sm:$0x1]
    %v2259 = vlaneseq
    %v2260 = vshrl.u32 %v2259, 7
    %v2261 = vsub.s32 0, %v2260
    %v2262 = vrot.slane %v2257, %v2261
    %v2264 = vadd.f32 %v2252, %v2262
    %vm2265 = vcmask 7168
    %2266 = vst.msk [vmem:[%s7] sm:$0xff] %vm2265, %v2264
    // Predicated region
    $region34: #{discriminator_forward.1} parent=1 // pred_check
      _
    $region35: #{discriminator_forward.1} parent=1 // pred_check_branch
      %2268 = sbr.rel (0) target = $region37
    $region36: #{discriminator_forward.1} parent=1 // pred_region
      _
    $region37: #{discriminator_forward.1} parent=1 // pred_fallthru
      _
    // Predicated region
    $region38: #{discriminator_forward.1} parent=1 // pred_check
      _
    $region39: #{discriminator_forward.1} parent=1 // pred_check_branch
      %2270 = sbr.rel (0) target = $region41
    $region40: #{discriminator_forward.1} parent=1 // pred_region
      _
    $region41: #{discriminator_forward.1} parent=1 // pred_fallthru
      _
    %2271 = vsyncpa [#allocation4], 1

</llo_original>
